<compile_context>
chip_gen: v7x
topology: tpu7x:2x2x1
jax: 0.10.0
libtpu: 0.0.40
codegen_flags: <defaults>
</compile_context>

<pallas_src>
import functools

import jax
import jax.numpy as jnp
from jax.experimental import pallas as pl
from jax.experimental.pallas import tpu as pltpu


def mil_kernel(x_ref, w1_ref, b1_ref, waf_ref, baf_ref, wa2t_ref, ba2_ref,
               w2_ref, b2_ref, wc1_ref, bc1_ref, wc2_ref, bc2_ref,
               prob_ref, an_ref,
               m_sc, l_sc, z_sc,
               *, n_instances, tile_n):
    i = pl.program_id(1)                      # instance-tile index (reduction axis)
    last = pl.num_programs(1) - 1

    @pl.when(i == 0)
    def _init():
        m_sc[...] = jnp.full_like(m_sc, -jnp.inf)
        l_sc[...] = jnp.zeros_like(l_sc)
        z_sc[...] = jnp.zeros_like(z_sc)

    # ---- feature extractor, first layer (bf16 MXU inputs, f32 accumulation) --
    x = x_ref[...]                                                    # (T, 784) bf16
    if x.dtype != jnp.bfloat16:               # trace-time fallback only
        x = x.astype(jnp.bfloat16)
    h1 = jnp.dot(x, w1_ref[...], preferred_element_type=jnp.float32) + b1_ref[...]
    h1 = jnp.maximum(h1, 0.0)                                         # (T, 128) f32

    # Ragged last tile: no wrapper pad, so the out-of-bounds rows of the x
    # block are garbage. Zero those rows of h1 so they cannot inject NaN/Inf
    # into the attention MLP or the p @ h1 pooling dot.
    row_ids = i * tile_n + jax.lax.broadcasted_iota(jnp.int32, (tile_n, 1), 0)
    h1 = jnp.where(row_ids < n_instances, h1, 0.0)

    # ---- fused attention MLP: a1 = relu(h1 @ (w2@wa1) + (b2@wa1 + ba1)) ----
    a1 = jnp.dot(h1, waf_ref[...], preferred_element_type=jnp.float32) + baf_ref[...]
    a1 = jnp.maximum(a1, 0.0)                                         # (T, 8) f32

    # Lane-dense attention logits in one dot_general: (1,8) · (T,8) -> (1,T).
    logit = jax.lax.dot_general(wa2t_ref[...], a1, (((1,), (1,)), ((), ())),
                                preferred_element_type=jnp.float32) + ba2_ref[...]
    lane_ids = i * tile_n + jax.lax.broadcasted_iota(jnp.int32, (1, tile_n), 1)
    logit = jnp.where(lane_ids < n_instances, logit, -jnp.inf)        # mask padding

    # ---- flash-style online softmax over the instance axis ----
    m_prev = m_sc[...]
    m_new = jnp.maximum(m_prev, jnp.max(logit, axis=1, keepdims=True))   # (1, 1)
    corr = jnp.exp(m_prev - m_new)
    p = jnp.exp(logit - m_new)                                           # (1, T)
    l_sc[...] = l_sc[...] * corr + jnp.sum(p, axis=1, keepdims=True)
    z_sc[...] = z_sc[...] * corr + jnp.dot(p, h1, preferred_element_type=jnp.float32)
    m_sc[...] = m_new

    # Stash raw logits lane-dense into the resident a_n output block.
    start = pl.multiple_of(i * tile_n, tile_n)
    an_ref[:, pl.ds(start, tile_n)] = logit

    # ---- finalize: apply w2/b2 once, classifier, normalize a_n ----
    @pl.when(i == last)
    def _finalize():
        inv_l = 1.0 / l_sc[...]                                          # exact f32
        # z = a_n @ h = ((a_n @ h1) @ w2) + b2   (sum(a_n) == 1)
        z = jnp.dot(z_sc[...] * inv_l, w2_ref[...],
                    preferred_element_type=jnp.float32) + b2_ref[...]    # (1, 16)
        c1 = jnp.maximum(jnp.dot(z, wc1_ref[...],
                                 preferred_element_type=jnp.float32) + bc1_ref[...],
                         0.0)                                            # (1, 8)
        prob_ref[...] = (jnp.dot(c1, wc2_ref[...],
                                 preferred_element_type=jnp.float32) + bc2_ref[...])
        # Padded lanes hold -inf logits -> exp() == 0; wrapper slices them off.
        # TODO(synk): for N >~ 1e4 store per-tile exp(logit - m_tile) plus the
        # per-tile max and rescale with per-tile scalars to avoid this O(N)
        # serial exp tail.
        an_ref[...] = jnp.exp(an_ref[...] - m_sc[...]) * inv_l


def init_params(key, n_class):
    """Deterministic synthetic parameters, PyTorch-Linear-like uniform init.

    Weights are stored as (in_features, out_features); the large 784x128
    weight is stored in bf16 (halves its HBM->VMEM DMA), everything else f32.
    """
    def linear(k, fan_in, fan_out, w_dtype=jnp.float32):
        kw, kb = jax.random.split(k)
        bound = 1.0 / (fan_in ** 0.5)
        w = jax.random.uniform(kw, (fan_in, fan_out), jnp.float32, -bound, bound)
        b = jax.random.uniform(kb, (1, fan_out), jnp.float32, -bound, bound)
        return w.astype(w_dtype), b

    ks = jax.random.split(key, 6)
    w1, b1 = linear(ks[0], 784, 128, jnp.bfloat16)
    w2, b2 = linear(ks[1], 128, 16)
    wa1, ba1 = linear(ks[2], 16, 8)
    wa2, ba2 = linear(ks[3], 8, 1)
    wc1, bc1 = linear(ks[4], 16, 8)
    wc2, bc2 = linear(ks[5], 8, n_class)
    return (w1, b1, w2, b2, wa1, ba1, wa2, ba2, wc1, bc1, wc2, bc2)


def mil_forward(inp, params, n_class, tile_n=None):
    """inp: (n_bags, N, 784); bags are a 'parallel' grid axis. n_bags=1
    reproduces the PyTorch module's single-bag forward exactly."""
    (w1, b1, w2, b2, wa1, ba1, wa2, ba2, wc1, bc1, wc2, bc2) = params
    n_bags, n, d = inp.shape

    if tile_n is None:
        # one 128-row tile for small bags, 1024-row tiles for large bags
        tile_n = min(1024, ((n + 127) // 128) * 128)
    assert tile_n % 128 == 0
    num_tiles = pl.cdiv(n, tile_n)            # ragged last tile, no jnp.pad copy
    n_pad = num_tiles * tile_n

    # Host-side algebraic fusion (exact in real arithmetic):
    #   relu(h @ wa1 + ba1) = relu(h1 @ (w2 @ wa1) + (b2 @ wa1 + ba1))
    w_af = w2.astype(jnp.float32) @ wa1       # (128, 8)
    b_af = b2 @ wa1 + ba1                     # (1, 8)
    wa2_t = wa2.reshape(1, 8)                 # (8,1) -> (1,8), lane-dense logits

    def resident(shape):
        # constant index_map: DMA'd once, single-buffered, resident in VMEM
        return pl.BlockSpec(shape, lambda b, i: (0, 0),
                            pipeline_mode=pl.Buffered(1))

    grid_spec = pltpu.PrefetchScalarGridSpec(
        num_scalar_prefetch=0,
        grid=(n_bags, num_tiles),
        in_specs=[
            pl.BlockSpec((None, tile_n, d), lambda b, i: (b, i, 0)),  # x: streamed
            resident(w1.shape), resident(b1.shape),
            resident(w_af.shape), resident(b_af.shape),
            resident(wa2_t.shape), resident(ba2.shape),
            resident(w2.shape), resident(b2.shape),
            resident(wc1.shape), resident(bc1.shape),
            resident(wc2.shape), resident(bc2.shape),
        ],
        out_specs=(
            pl.BlockSpec((1, n_class), lambda b, i: (b, 0)),
            pl.BlockSpec((1, n_pad), lambda b, i: (b, 0)),   # lane-dense a_n row
        ),
        scratch_shapes=[
            pltpu.VMEM((1, 1), jnp.float32),     # running max
            pltpu.VMEM((1, 1), jnp.float32),     # running sum(exp)
            pltpu.VMEM((1, 128), jnp.float32),   # rescaled (a_n @ h1) accumulator
        ],
    )

    kernel = functools.partial(mil_kernel, n_instances=n, tile_n=tile_n)
    class_prob, a_n = pl.pallas_call(
        kernel,
        grid_spec=grid_spec,
        out_shape=(jax.ShapeDtypeStruct((n_bags, n_class), jnp.float32),
                   jax.ShapeDtypeStruct((n_bags, n_pad), jnp.float32)),
        compiler_params=pltpu.CompilerParams(
            dimension_semantics=("parallel", "arbitrary"),  # bags || , tiles seq
            vmem_limit_bytes=32 * 1024 * 1024),
    )(inp, w1, b1, w_af, b_af, wa2_t, ba2, w2, b2, wc1, bc1, wc2, bc2)

    if n_pad != n:
        a_n = a_n[:, :n]                       # tiny slice (padded lanes are 0)
    return class_prob, a_n


def mil_reference(inp, params, n_class):
    """Plain-JAX single-bag reference using the *unfused* module math
    (bf16 inputs for the first GEMM, f32 accumulation, f32 elsewhere)."""
    (w1, b1, w2, b2, wa1, ba1, wa2, ba2, wc1, bc1, wc2, bc2) = params
    x = inp[0]
    h1 = jnp.maximum(jnp.dot(x.astype(jnp.bfloat16), w1,
                             preferred_element_type=jnp.float32) + b1, 0.0)
    h = jnp.dot(h1, w2, preferred_element_type=jnp.float32) + b2
    a = jnp.maximum(h @ wa1 + ba1, 0.0) @ wa2 + ba2          # (N, 1)
    a_n = jax.nn.softmax(a.T, axis=1)                         # (1, N)
    z = a_n @ h                                               # (1, 16)
    class_prob = (jnp.maximum(z @ wc1 + bc1, 0.0) @ wc2 + bc2).reshape(1, n_class)
    return class_prob, a_n


if __name__ == "__main__":
    key = jax.random.PRNGKey(0)
    k_x1, k_x2, k_x3, k_p = jax.random.split(key, 4)

    N_CLASS = 4
    params = init_params(k_p, N_CLASS)

    # Bag inputs are produced directly in bf16 (the kernel is DMA-bound on the
    # x stream; bf16 x halves HBM bytes with no separate cast pass).

    # ---- bag 1: tiny bag (single tile / single grid step) ----
    n1 = 8
    x1 = jax.random.normal(k_x1, (1, n1, 784), dtype=jnp.bfloat16)
    prob1, an1 = mil_forward(x1, params, N_CLASS)
    jax.block_until_ready((prob1, an1))
    ref_p1, ref_a1 = mil_reference(x1, params, N_CLASS)
    assert prob1.shape == (1, N_CLASS) and an1.shape == (1, n1)
    assert jnp.allclose(prob1, ref_p1, atol=5e-3, rtol=1e-2)
    assert jnp.allclose(an1, ref_a1, atol=1e-3, rtol=1e-2)
    assert jnp.allclose(jnp.sum(an1), 1.0, atol=1e-5)

    # ---- bag 2: larger ragged bag -> 3 grid steps, online softmax + masking ----
    n2 = 300
    x2 = jax.random.normal(k_x2, (1, n2, 784), dtype=jnp.bfloat16)
    prob2, an2 = mil_forward(x2, params, N_CLASS, tile_n=128)
    jax.block_until_ready((prob2, an2))
    ref_p2, ref_a2 = mil_reference(x2, params, N_CLASS)
    assert prob2.shape == (1, N_CLASS) and an2.shape == (1, n2)
    assert jnp.allclose(prob2, ref_p2, atol=5e-3, rtol=1e-2)
    assert jnp.allclose(an2, ref_a2, atol=1e-3, rtol=1e-2)
    assert jnp.allclose(jnp.sum(an2), 1.0, atol=1e-5)

    # ---- multiple bags in one pallas_call (leading "parallel" bag axis) ----
    n_bags, n3 = 2, 300
    x3 = jax.random.normal(k_x3, (n_bags, n3, 784), dtype=jnp.bfloat16)
    prob3, an3 = mil_forward(x3, params, N_CLASS, tile_n=256)
    jax.block_until_ready((prob3, an3))
    assert prob3.shape == (n_bags, N_CLASS) and an3.shape == (n_bags, n3)
    for b in range(n_bags):
        ref_p, ref_a = mil_reference(x3[b:b + 1], params, N_CLASS)
        assert jnp.allclose(prob3[b:b + 1], ref_p, atol=5e-3, rtol=1e-2)
        assert jnp.allclose(an3[b:b + 1], ref_a, atol=1e-3, rtol=1e-2)
    assert jnp.allclose(jnp.sum(an3, axis=1), jnp.ones((n_bags,)), atol=1e-5)

    print("KERNEL_OK")
</pallas_src>

<mosaic_0001>
module attributes {stable_mosaic.version = 11 : i64} {
  func.func @mil_kernel(%arg0: i32, %arg1: i32, %arg2: memref<1x128x784xbf16, #tpu.memory_space<vmem>>, %arg3: memref<784x128xbf16, #tpu.memory_space<vmem>>, %arg4: memref<1x128xf32, #tpu.memory_space<vmem>>, %arg5: memref<128x8xf32, #tpu.memory_space<vmem>>, %arg6: memref<1x8xf32, #tpu.memory_space<vmem>>, %arg7: memref<1x8xf32, #tpu.memory_space<vmem>>, %arg8: memref<1x1xf32, #tpu.memory_space<vmem>>, %arg9: memref<128x16xf32, #tpu.memory_space<vmem>>, %arg10: memref<1x16xf32, #tpu.memory_space<vmem>>, %arg11: memref<16x8xf32, #tpu.memory_space<vmem>>, %arg12: memref<1x8xf32, #tpu.memory_space<vmem>>, %arg13: memref<8x4xf32, #tpu.memory_space<vmem>>, %arg14: memref<1x4xf32, #tpu.memory_space<vmem>>, %arg15: memref<1x4xf32, #tpu.memory_space<vmem>>, %arg16: memref<1x128xf32, #tpu.memory_space<vmem>>, %arg17: memref<1x1xf32, #tpu.memory_space<vmem>>, %arg18: memref<1x1xf32, #tpu.memory_space<vmem>>, %arg19: memref<1x128xf32, #tpu.memory_space<vmem>>) attributes {dimension_semantics = [#tpu.dimension_semantics<parallel>, #tpu.dimension_semantics<arbitrary>], iteration_bounds = array<i64: 1, 1>, scalar_prefetch = 0 : i64, scratch_operands = 3 : i64, tpu.core_type = #tpu.core_type<tc>, window_params = [{transform_indices = @transform_0, window_bounds = array<i64: 1, 128, 784>}, {pipeline_mode = #tpu.pipeline_mode<synchronous>, transform_indices = @transform_1, window_bounds = array<i64: 784, 128>}, {pipeline_mode = #tpu.pipeline_mode<synchronous>, transform_indices = @transform_2, window_bounds = array<i64: 1, 128>}, {pipeline_mode = #tpu.pipeline_mode<synchronous>, transform_indices = @transform_3, window_bounds = array<i64: 128, 8>}, {pipeline_mode = #tpu.pipeline_mode<synchronous>, transform_indices = @transform_4, window_bounds = array<i64: 1, 8>}, {pipeline_mode = #tpu.pipeline_mode<synchronous>, transform_indices = @transform_5, window_bounds = array<i64: 1, 8>}, {pipeline_mode = #tpu.pipeline_mode<synchronous>, transform_indices = @transform_6, window_bounds = array<i64: 1, 1>}, {pipeline_mode = #tpu.pipeline_mode<synchronous>, transform_indices = @transform_7, window_bounds = array<i64: 128, 16>}, {pipeline_mode = #tpu.pipeline_mode<synchronous>, transform_indices = @transform_8, window_bounds = array<i64: 1, 16>}, {pipeline_mode = #tpu.pipeline_mode<synchronous>, transform_indices = @transform_9, window_bounds = array<i64: 16, 8>}, {pipeline_mode = #tpu.pipeline_mode<synchronous>, transform_indices = @transform_10, window_bounds = array<i64: 1, 8>}, {pipeline_mode = #tpu.pipeline_mode<synchronous>, transform_indices = @transform_11, window_bounds = array<i64: 8, 4>}, {pipeline_mode = #tpu.pipeline_mode<synchronous>, transform_indices = @transform_12, window_bounds = array<i64: 1, 4>}, {transform_indices = @transform_13, window_bounds = array<i64: 1, 4>}, {transform_indices = @transform_14, window_bounds = array<i64: 1, 128>}]} {
    %c0_i32 = arith.constant 0 : i32
    %0 = arith.cmpi eq, %arg1, %c0_i32 : i32
    %1 = arith.extui %0 : i1 to i32
    %c0_i32_0 = arith.constant 0 : i32
    %2 = arith.cmpi ne, %1, %c0_i32_0 : i32
    scf.if %2 {
      %cst_42 = arith.constant 0xFF800000 : f32
      %71 = vector.broadcast %cst_42 : f32 to vector<1x1xf32>
      %c0_43 = arith.constant 0 : index
      %c0_44 = arith.constant 0 : index
      %72 = vector.load %arg17[%c0_43, %c0_44] : memref<1x1xf32, #tpu.memory_space<vmem>>, vector<1x1xf32>
      tpu.vector_store %arg17[%c0_43, %c0_44], %71 {strides = array<i32>} : memref<1x1xf32, #tpu.memory_space<vmem>>, vector<1x1xf32>,
      %cst_45 = arith.constant 0.000000e+00 : f32
      %73 = vector.broadcast %cst_45 : f32 to vector<1x1xf32>
      %c0_46 = arith.constant 0 : index
      %c0_47 = arith.constant 0 : index
      %74 = vector.load %arg18[%c0_46, %c0_47] : memref<1x1xf32, #tpu.memory_space<vmem>>, vector<1x1xf32>
      tpu.vector_store %arg18[%c0_46, %c0_47], %73 {strides = array<i32>} : memref<1x1xf32, #tpu.memory_space<vmem>>, vector<1x1xf32>,
      %cst_48 = arith.constant 0.000000e+00 : f32
      %75 = vector.broadcast %cst_48 : f32 to vector<1x128xf32>
      %c0_49 = arith.constant 0 : index
      %c0_50 = arith.constant 0 : index
      %76 = vector.load %arg19[%c0_49, %c0_50] : memref<1x128xf32, #tpu.memory_space<vmem>>, vector<1x128xf32>
      tpu.vector_store %arg19[%c0_49, %c0_50], %75 {strides = array<i32>} : memref<1x128xf32, #tpu.memory_space<vmem>>, vector<1x128xf32>,
    } else {
    }
    %c0 = arith.constant 0 : index
    %c0_1 = arith.constant 0 : index
    %c0_2 = arith.constant 0 : index
    %3 = vector.load %arg2[%c0, %c0_1, %c0_2] : memref<1x128x784xbf16, #tpu.memory_space<vmem>>, vector<1x128x784xbf16>
    %4 = vector.shape_cast %3 : vector<1x128x784xbf16> to vector<128x784xbf16>
    %c0_3 = arith.constant 0 : index
    %c0_4 = arith.constant 0 : index
    %5 = vector.load %arg3[%c0_3, %c0_4] : memref<784x128xbf16, #tpu.memory_space<vmem>>, vector<784x128xbf16>
    %cst = arith.constant dense<0.000000e+00> : vector<128x128xf32>
    %6 = tpu.matmul %4, %5, %cst {dimension_numbers = #tpu.dot_dimension_numbers<[1], [0], [0], [1], [0, 0, 1, 1], [], []>} : vector<128x784xbf16>, vector<784x128xbf16>, vector<128x128xf32> -> vector<128x128xf32>
    %c0_5 = arith.constant 0 : index
    %c0_6 = arith.constant 0 : index
    %7 = vector.load %arg4[%c0_5, %c0_6] : memref<1x128xf32, #tpu.memory_space<vmem>>, vector<1x128xf32>
    %8 = vector.broadcast %7 : vector<1x128xf32> to vector<128x128xf32>
    %9 = arith.addf %6, %8 : vector<128x128xf32>
    %cst_7 = arith.constant 0.000000e+00 : f32
    %10 = vector.broadcast %cst_7 : f32 to vector<128x128xf32>
    %11 = arith.maximumf %9, %10 : vector<128x128xf32>
    %c128_i32 = arith.constant 128 : i32
    %12 = arith.muli %arg1, %c128_i32 : i32
    %13 = tpu.iota {dimensions = array<i32: 0>} : vector<128x1xi32>
    %14 = vector.broadcast %12 : i32 to vector<128x1xi32>
    %15 = arith.addi %14, %13 : vector<128x1xi32>
    %c8_i32 = arith.constant 8 : i32
    %16 = vector.broadcast %c8_i32 : i32 to vector<128x1xi32>
    %17 = arith.cmpi slt, %15, %16 : vector<128x1xi32>
    %cst_8 = arith.constant 0.000000e+00 : f32
    %18 = vector.shape_cast %17 : vector<128x1xi1> to vector<128x1xi1>
    %19 = vector.broadcast %18 : vector<128x1xi1> to vector<128x128xi1>
    %20 = vector.broadcast %cst_8 : f32 to vector<128x128xf32>
    %21 = arith.select %19, %11, %20 : vector<128x128xi1>, vector<128x128xf32>
    %c0_9 = arith.constant 0 : index
    %c0_10 = arith.constant 0 : index
    %22 = vector.load %arg5[%c0_9, %c0_10] : memref<128x8xf32, #tpu.memory_space<vmem>>, vector<128x8xf32>
    %cst_11 = arith.constant dense<0.000000e+00> : vector<128x8xf32>
    %23 = tpu.matmul %21, %22, %cst_11 {dimension_numbers = #tpu.dot_dimension_numbers<[1], [0], [0], [1], [0, 0, 1, 1], [], []>} : vector<128x128xf32>, vector<128x8xf32>, vector<128x8xf32> -> vector<128x8xf32>
    %c0_12 = arith.constant 0 : index
    %c0_13 = arith.constant 0 : index
    %24 = vector.load %arg6[%c0_12, %c0_13] : memref<1x8xf32, #tpu.memory_space<vmem>>, vector<1x8xf32>
    %25 = vector.broadcast %24 : vector<1x8xf32> to vector<128x8xf32>
    %26 = arith.addf %23, %25 : vector<128x8xf32>
    %cst_14 = arith.constant 0.000000e+00 : f32
    %27 = vector.broadcast %cst_14 : f32 to vector<128x8xf32>
    %28 = arith.maximumf %26, %27 : vector<128x8xf32>
    %c0_15 = arith.constant 0 : index
    %c0_16 = arith.constant 0 : index
    %29 = vector.load %arg7[%c0_15, %c0_16] : memref<1x8xf32, #tpu.memory_space<vmem>>, vector<1x8xf32>
    %cst_17 = arith.constant dense<0.000000e+00> : vector<1x128xf32>
    %30 = tpu.matmul %29, %28, %cst_17 {dimension_numbers = #tpu.dot_dimension_numbers<[1], [1], [0], [0], [0, 0, 1, 0], [], []>} : vector<1x8xf32>, vector<128x8xf32>, vector<1x128xf32> -> vector<1x128xf32>
    %c0_18 = arith.constant 0 : index
    %c0_19 = arith.constant 0 : index
    %31 = vector.load %arg8[%c0_18, %c0_19] : memref<1x1xf32, #tpu.memory_space<vmem>>, vector<1x1xf32>
    %32 = vector.broadcast %31 : vector<1x1xf32> to vector<1x128xf32>
    %33 = arith.addf %30, %32 : vector<1x128xf32>
    %c128_i32_20 = arith.constant 128 : i32
    %34 = arith.muli %arg1, %c128_i32_20 : i32
    %35 = tpu.iota {dimensions = array<i32: 1>} : vector<1x128xi32>
    %36 = vector.broadcast %34 : i32 to vector<1x128xi32>
    %37 = arith.addi %36, %35 : vector<1x128xi32>
    %c8_i32_21 = arith.constant 8 : i32
    %38 = vector.broadcast %c8_i32_21 : i32 to vector<1x128xi32>
    %39 = arith.cmpi slt, %37, %38 : vector<1x128xi32>
    %cst_22 = arith.constant 0xFF800000 : f32
    %40 = vector.broadcast %cst_22 : f32 to vector<1x128xf32>
    %41 = arith.select %39, %33, %40 : vector<1x128xi1>, vector<1x128xf32>
    %c0_23 = arith.constant 0 : index
    %c0_24 = arith.constant 0 : index
    %42 = vector.load %arg17[%c0_23, %c0_24] : memref<1x1xf32, #tpu.memory_space<vmem>>, vector<1x1xf32>
    %cst_25 = arith.constant dense<0xFF800000> : vector<1xf32>
    %43 = vector.multi_reduction <maximumf>, %41, %cst_25 [1] : vector<1x128xf32> to vector<1xf32>
    %44 = vector.shape_cast %43 : vector<1xf32> to vector<1x1xf32>
    %45 = arith.maximumf %42, %44 : vector<1x1xf32>
    %46 = arith.subf %42, %45 : vector<1x1xf32>
    %47 = math.exp %46 : vector<1x1xf32>
    %48 = vector.broadcast %45 : vector<1x1xf32> to vector<1x128xf32>
    %49 = arith.subf %41, %48 : vector<1x128xf32>
    %50 = math.exp %49 : vector<1x128xf32>
    %c0_26 = arith.constant 0 : index
    %c0_27 = arith.constant 0 : index
    %51 = vector.load %arg18[%c0_26, %c0_27] : memref<1x1xf32, #tpu.memory_space<vmem>>, vector<1x1xf32>
    %52 = arith.mulf %51, %47 : vector<1x1xf32>
    %cst_28 = arith.constant dense<0.000000e+00> : vector<1xf32>
    %53 = vector.multi_reduction <add>, %50, %cst_28 [1] : vector<1x128xf32> to vector<1xf32>
    %54 = vector.shape_cast %53 : vector<1xf32> to vector<1x1xf32>
    %55 = arith.addf %52, %54 : vector<1x1xf32>
    %c0_29 = arith.constant 0 : index
    %c0_30 = arith.constant 0 : index
    %56 = vector.load %arg18[%c0_29, %c0_30] : memref<1x1xf32, #tpu.memory_space<vmem>>, vector<1x1xf32>
    tpu.vector_store %arg18[%c0_29, %c0_30], %55 {strides = array<i32>} : memref<1x1xf32, #tpu.memory_space<vmem>>, vector<1x1xf32>,
    %c0_31 = arith.constant 0 : index
    %c0_32 = arith.constant 0 : index
    %57 = vector.load %arg19[%c0_31, %c0_32] : memref<1x128xf32, #tpu.memory_space<vmem>>, vector<1x128xf32>
    %58 = vector.broadcast %47 : vector<1x1xf32> to vector<1x128xf32>
    %59 = arith.mulf %57, %58 : vector<1x128xf32>
    %cst_33 = arith.constant dense<0.000000e+00> : vector<1x128xf32>
    %60 = tpu.matmul %50, %21, %cst_33 {dimension_numbers = #tpu.dot_dimension_numbers<[1], [0], [0], [1], [0, 0, 1, 1], [], []>} : vector<1x128xf32>, vector<128x128xf32>, vector<1x128xf32> -> vector<1x128xf32>
    %61 = arith.addf %59, %60 : vector<1x128xf32>
    %c0_34 = arith.constant 0 : index
    %c0_35 = arith.constant 0 : index
    %62 = vector.load %arg19[%c0_34, %c0_35] : memref<1x128xf32, #tpu.memory_space<vmem>>, vector<1x128xf32>
    tpu.vector_store %arg19[%c0_34, %c0_35], %61 {strides = array<i32>} : memref<1x128xf32, #tpu.memory_space<vmem>>, vector<1x128xf32>,
    %c0_36 = arith.constant 0 : index
    %c0_37 = arith.constant 0 : index
    %63 = vector.load %arg17[%c0_36, %c0_37] : memref<1x1xf32, #tpu.memory_space<vmem>>, vector<1x1xf32>
    tpu.vector_store %arg17[%c0_36, %c0_37], %45 {strides = array<i32>} : memref<1x1xf32, #tpu.memory_space<vmem>>, vector<1x1xf32>,
    %c128_i32_38 = arith.constant 128 : i32
    %64 = arith.muli %arg1, %c128_i32_38 : i32
    %65 = tpu.assume_multiple %64, 128 : i32
    %c0_39 = arith.constant 0 : index
    %66 = arith.index_cast %65 : i32 to index
    %67 = vector.load %arg16[%c0_39, %66] : memref<1x128xf32, #tpu.memory_space<vmem>>, vector<1x128xf32>
    tpu.vector_store %arg16[%c0_39, %66], %41 {strides = array<i32>} : memref<1x128xf32, #tpu.memory_space<vmem>>, vector<1x128xf32>,
    %c0_i32_40 = arith.constant 0 : i32
    %68 = arith.cmpi eq, %arg1, %c0_i32_40 : i32
    %69 = arith.extui %68 : i1 to i32
    %c0_i32_41 = arith.constant 0 : i32
    %70 = arith.cmpi ne, %69, %c0_i32_41 : i32
    scf.if %70 {
      %c0_42 = arith.constant 0 : index
      %c0_43 = arith.constant 0 : index
      %71 = vector.load %arg18[%c0_42, %c0_43] : memref<1x1xf32, #tpu.memory_space<vmem>>, vector<1x1xf32>
      %cst_44 = arith.constant 1.000000e+00 : f32
      %72 = vector.broadcast %cst_44 : f32 to vector<1x1xf32>
      %73 = arith.divf %72, %71 : vector<1x1xf32>
      %c0_45 = arith.constant 0 : index
      %c0_46 = arith.constant 0 : index
      %74 = vector.load %arg19[%c0_45, %c0_46] : memref<1x128xf32, #tpu.memory_space<vmem>>, vector<1x128xf32>
      %75 = vector.broadcast %73 : vector<1x1xf32> to vector<1x128xf32>
      %76 = arith.mulf %74, %75 : vector<1x128xf32>
      %c0_47 = arith.constant 0 : index
      %c0_48 = arith.constant 0 : index
      %77 = vector.load %arg9[%c0_47, %c0_48] : memref<128x16xf32, #tpu.memory_space<vmem>>, vector<128x16xf32>
      %cst_49 = arith.constant dense<0.000000e+00> : vector<1x16xf32>
      %78 = tpu.matmul %76, %77, %cst_49 {dimension_numbers = #tpu.dot_dimension_numbers<[1], [0], [0], [1], [0, 0, 1, 1], [], []>} : vector<1x128xf32>, vector<128x16xf32>, vector<1x16xf32> -> vector<1x16xf32>
      %c0_50 = arith.constant 0 : index
      %c0_51 = arith.constant 0 : index
      %79 = vector.load %arg10[%c0_50, %c0_51] : memref<1x16xf32, #tpu.memory_space<vmem>>, vector<1x16xf32>
      %80 = arith.addf %78, %79 : vector<1x16xf32>
      %c0_52 = arith.constant 0 : index
      %c0_53 = arith.constant 0 : index
      %81 = vector.load %arg11[%c0_52, %c0_53] : memref<16x8xf32, #tpu.memory_space<vmem>>, vector<16x8xf32>
      %cst_54 = arith.constant dense<0.000000e+00> : vector<1x8xf32>
      %82 = tpu.matmul %80, %81, %cst_54 {dimension_numbers = #tpu.dot_dimension_numbers<[1], [0], [0], [1], [0, 0, 1, 1], [], []>} : vector<1x16xf32>, vector<16x8xf32>, vector<1x8xf32> -> vector<1x8xf32>
      %c0_55 = arith.constant 0 : index
      %c0_56 = arith.constant 0 : index
      %83 = vector.load %arg12[%c0_55, %c0_56] : memref<1x8xf32, #tpu.memory_space<vmem>>, vector<1x8xf32>
      %84 = arith.addf %82, %83 : vector<1x8xf32>
      %cst_57 = arith.constant 0.000000e+00 : f32
      %85 = vector.broadcast %cst_57 : f32 to vector<1x8xf32>
      %86 = arith.maximumf %84, %85 : vector<1x8xf32>
      %c0_58 = arith.constant 0 : index
      %c0_59 = arith.constant 0 : index
      %87 = vector.load %arg13[%c0_58, %c0_59] : memref<8x4xf32, #tpu.memory_space<vmem>>, vector<8x4xf32>
      %cst_60 = arith.constant dense<0.000000e+00> : vector<1x4xf32>
      %88 = tpu.matmul %86, %87, %cst_60 {dimension_numbers = #tpu.dot_dimension_numbers<[1], [0], [0], [1], [0, 0, 1, 1], [], []>} : vector<1x8xf32>, vector<8x4xf32>, vector<1x4xf32> -> vector<1x4xf32>
      %c0_61 = arith.constant 0 : index
      %c0_62 = arith.constant 0 : index
      %89 = vector.load %arg14[%c0_61, %c0_62] : memref<1x4xf32, #tpu.memory_space<vmem>>, vector<1x4xf32>
      %90 = arith.addf %88, %89 : vector<1x4xf32>
      %c0_63 = arith.constant 0 : index
      %c0_64 = arith.constant 0 : index
      %91 = vector.load %arg15[%c0_63, %c0_64] : memref<1x4xf32, #tpu.memory_space<vmem>>, vector<1x4xf32>
      tpu.vector_store %arg15[%c0_63, %c0_64], %90 {strides = array<i32>} : memref<1x4xf32, #tpu.memory_space<vmem>>, vector<1x4xf32>,
      %c0_65 = arith.constant 0 : index
      %c0_66 = arith.constant 0 : index
      %92 = vector.load %arg16[%c0_65, %c0_66] : memref<1x128xf32, #tpu.memory_space<vmem>>, vector<1x128xf32>
      %c0_67 = arith.constant 0 : index
      %c0_68 = arith.constant 0 : index
      %93 = vector.load %arg17[%c0_67, %c0_68] : memref<1x1xf32, #tpu.memory_space<vmem>>, vector<1x1xf32>
      %94 = vector.broadcast %93 : vector<1x1xf32> to vector<1x128xf32>
      %95 = arith.subf %92, %94 : vector<1x128xf32>
      %96 = math.exp %95 : vector<1x128xf32>
      %97 = vector.broadcast %73 : vector<1x1xf32> to vector<1x128xf32>
      %98 = arith.mulf %96, %97 : vector<1x128xf32>
      %c0_69 = arith.constant 0 : index
      %c0_70 = arith.constant 0 : index
      %99 = vector.load %arg16[%c0_69, %c0_70] : memref<1x128xf32, #tpu.memory_space<vmem>>, vector<1x128xf32>
      tpu.vector_store %arg16[%c0_69, %c0_70], %98 {strides = array<i32>} : memref<1x128xf32, #tpu.memory_space<vmem>>, vector<1x128xf32>,
    } else {
    }
    return
  }
  func.func @transform_0(%arg0: i32, %arg1: i32) -> (i32, i32, i32) {
    %c0_i32 = arith.constant 0 : i32
    %c0_i32_0 = arith.constant 0 : i32
    return %arg0, %arg1, %c0_i32 : i32, i32, i32
  }
  func.func @transform_1(%arg0: i32, %arg1: i32) -> (i32, i32) {
    %c0_i32 = arith.constant 0 : i32
    %c0_i32_0 = arith.constant 0 : i32
    %c0_i32_1 = arith.constant 0 : i32
    return %c0_i32, %c0_i32_0 : i32, i32
  }
  func.func @transform_2(%arg0: i32, %arg1: i32) -> (i32, i32) {
    %c0_i32 = arith.constant 0 : i32
    %c0_i32_0 = arith.constant 0 : i32
    %c0_i32_1 = arith.constant 0 : i32
    return %c0_i32, %c0_i32_0 : i32, i32
  }
  func.func @transform_3(%arg0: i32, %arg1: i32) -> (i32, i32) {
    %c0_i32 = arith.constant 0 : i32
    %c0_i32_0 = arith.constant 0 : i32
    %c0_i32_1 = arith.constant 0 : i32
    return %c0_i32, %c0_i32_0 : i32, i32
  }
  func.func @transform_4(%arg0: i32, %arg1: i32) -> (i32, i32) {
    %c0_i32 = arith.constant 0 : i32
    %c0_i32_0 = arith.constant 0 : i32
    %c0_i32_1 = arith.constant 0 : i32
    return %c0_i32, %c0_i32_0 : i32, i32
  }
  func.func @transform_5(%arg0: i32, %arg1: i32) -> (i32, i32) {
    %c0_i32 = arith.constant 0 : i32
    %c0_i32_0 = arith.constant 0 : i32
    %c0_i32_1 = arith.constant 0 : i32
    return %c0_i32, %c0_i32_0 : i32, i32
  }
  func.func @transform_6(%arg0: i32, %arg1: i32) -> (i32, i32) {
    %c0_i32 = arith.constant 0 : i32
    %c0_i32_0 = arith.constant 0 : i32
    %c0_i32_1 = arith.constant 0 : i32
    return %c0_i32, %c0_i32_0 : i32, i32
  }
  func.func @transform_7(%arg0: i32, %arg1: i32) -> (i32, i32) {
    %c0_i32 = arith.constant 0 : i32
    %c0_i32_0 = arith.constant 0 : i32
    %c0_i32_1 = arith.constant 0 : i32
    return %c0_i32, %c0_i32_0 : i32, i32
  }
  func.func @transform_8(%arg0: i32, %arg1: i32) -> (i32, i32) {
    %c0_i32 = arith.constant 0 : i32
    %c0_i32_0 = arith.constant 0 : i32
    %c0_i32_1 = arith.constant 0 : i32
    return %c0_i32, %c0_i32_0 : i32, i32
  }
  func.func @transform_9(%arg0: i32, %arg1: i32) -> (i32, i32) {
    %c0_i32 = arith.constant 0 : i32
    %c0_i32_0 = arith.constant 0 : i32
    %c0_i32_1 = arith.constant 0 : i32
    return %c0_i32, %c0_i32_0 : i32, i32
  }
  func.func @transform_10(%arg0: i32, %arg1: i32) -> (i32, i32) {
    %c0_i32 = arith.constant 0 : i32
    %c0_i32_0 = arith.constant 0 : i32
    %c0_i32_1 = arith.constant 0 : i32
    return %c0_i32, %c0_i32_0 : i32, i32
  }
  func.func @transform_11(%arg0: i32, %arg1: i32) -> (i32, i32) {
    %c0_i32 = arith.constant 0 : i32
    %c0_i32_0 = arith.constant 0 : i32
    %c0_i32_1 = arith.constant 0 : i32
    return %c0_i32, %c0_i32_0 : i32, i32
  }
  func.func @transform_12(%arg0: i32, %arg1: i32) -> (i32, i32) {
    %c0_i32 = arith.constant 0 : i32
    %c0_i32_0 = arith.constant 0 : i32
    %c0_i32_1 = arith.constant 0 : i32
    return %c0_i32, %c0_i32_0 : i32, i32
  }
  func.func @transform_13(%arg0: i32, %arg1: i32) -> (i32, i32) {
    %c0_i32 = arith.constant 0 : i32
    %c0_i32_0 = arith.constant 0 : i32
    return %arg0, %c0_i32 : i32, i32
  }
  func.func @transform_14(%arg0: i32, %arg1: i32) -> (i32, i32) {
    %c0_i32 = arith.constant 0 : i32
    %c0_i32_0 = arith.constant 0 : i32
    return %arg0, %c0_i32 : i32, i32
  }
}

</mosaic_0001>

<llo_original>
// kernel: tpu_custom_call.1
$region0: #{tpu_custom_call.1}
  #allocation0 [shape = 'u32[]', space=smem, size = 0x4, offset = 0x4, fixed_abs, tag = 'smem constant byte address 0x4 - core index']
  #allocation1 [shape = 'u32[144,128]{1,0:T(1,128)}', space=vmem, size = 0x12000, scoped, tag = 'internal scratch']
  #allocation2 [shape = 'f32[1,1]{1,0:T(1,128)}', space=vmem, size = 0x200, scoped, tag = 'scratch operand']
  #allocation3 [shape = 'f32[1,1]{1,0:T(1,128)}', space=vmem, size = 0x200, scoped, tag = 'scratch operand']
  #allocation4 [shape = 'f32[1,128]{1,0:T(1,128)}', space=vmem, size = 0x200, scoped, tag = 'scratch operand']
  #allocation5 [shape = 'f32[1,1]{1,0:T(1,128)S(1)}', space=vmem, size = 0x200, scoped, tag = 'scoped memory for tpu_custom_call.1']
  %s0 = inlined_call_operand.vmem [shape: bf16[1,8,784], index: 0, kind: input, shape index: {}]
  %s1 = inlined_call_operand.hbm [shape: bf16[784,128], index: 1, kind: input, shape index: {}]
  %s2 = inlined_call_operand.vmem [shape: f32[1,128], index: 2, kind: input, shape index: {}]
  %s3 = inlined_call_operand.vmem [shape: f32[128,8], index: 3, kind: input, shape index: {}]
  %s4 = inlined_call_operand.vmem [shape: f32[1,8], index: 4, kind: input, shape index: {}]
  %s5 = inlined_call_operand.vmem [shape: f32[1,8], index: 5, kind: input, shape index: {}]
  %s6 = inlined_call_operand.<no memory space> [shape: f32[1,1], index: 6, kind: input, shape index: {}]
  %s7 = inlined_call_operand.vmem [shape: f32[128,16], index: 7, kind: input, shape index: {}]
  %s8 = inlined_call_operand.vmem [shape: f32[1,16], index: 8, kind: input, shape index: {}]
  %s9 = inlined_call_operand.vmem [shape: f32[16,8], index: 9, kind: input, shape index: {}]
  %s10 = inlined_call_operand.vmem [shape: f32[1,8], index: 10, kind: input, shape index: {}]
  %s11 = inlined_call_operand.vmem [shape: f32[8,4], index: 11, kind: input, shape index: {}]
  %s12 = inlined_call_operand.vmem [shape: f32[1,4], index: 12, kind: input, shape index: {}]
  %s13 = inlined_call_operand.hbm [shape: f32[1,4], index: 13, kind: output, shape index: {0}]
  %s14 = inlined_call_operand.hbm [shape: f32[1,128], index: 14, kind: output, shape index: {1}]
  %15 = xla_tuple %s13, %s14
  %s16 = sld [smem:[#allocation0]]
  $region82: #{tpu_custom_call.1} parent=0
    _
  %s18 = ssub.s32 1, %s16
  %s19 = scalar_select 0, %s18, %s16
  %v20 = vstv %s6
  %21 = vst [vmem:[#allocation5] sm:$0x1] %v20
  $region1: #{tpu_custom_call.1} parent=0
    #allocation6 [shape = 'u8[200704]{0}', space=vmem, size = 0x31000, scoped, tag = 'input window, operand 1, single buffered']
    #allocation7 [shape = 's32[1]{0}', space=sflag, size = 0x4, scoped, tag = 'scoped memory for tpu_custom_call.1']
    #allocation8 [shape = 's32[1]{0}', space=sflag, size = 0x4, scoped, tag = 'scoped memory for tpu_custom_call.1']
    #allocation9 [shape = 'u8[512]{0}', space=vmem, size = 0x400, scoped, tag = 'output window, operand 0, single buffered']
    #allocation10 [shape = 'u8[512]{0}', space=vmem, size = 0x400, scoped, tag = 'output window, operand 1, single buffered']
    #allocation11 [shape = 's32[1]{0}', space=sflag, size = 0x4, scoped, tag = 'scoped memory for tpu_custom_call.1']
    %22 = vsyncpa [#allocation7], 0
    %23 = vsyncpa [#allocation8], 0
    %24 = vsyncpa [#allocation11], 0
    // Predicated region
    $region2: #{tpu_custom_call.1} parent=1 // pred_check
      _
    $region3: #{tpu_custom_call.1} parent=1 // pred_check_branch
      %26 = sbr.rel (0) target = $region5
    $region4: #{tpu_custom_call.1} parent=1 // pred_region
      _
    $region5: #{tpu_custom_call.1} parent=1 // pred_fallthru
      _
    // Predicated region
    $region6: #{tpu_custom_call.1} parent=1 // pred_check
      _
    $region7: #{tpu_custom_call.1} parent=1 // pred_check_branch
      %28 = sbr.rel (0) target = $region9
    $region8: #{tpu_custom_call.1} parent=1 // pred_region
      %s30 = ssub.s32 6272, 6272
      %31 = vsyncadd [#allocation7], %s30
      %s32 = sshll.u32 [#allocation6], 4
      %s33 = int_to_ptr.vmem [resolvable:$true] %s32
      %38 = dma.hbm_to_vmem [thread:$0]  %s1, 6272, %s33, [#allocation7], 64, 64, 4
    $region9: #{tpu_custom_call.1} parent=1 // pred_fallthru
      _
    // Predicated region
    $region10: #{tpu_custom_call.1} parent=1 // pred_check
      _
    $region11: #{tpu_custom_call.1} parent=1 // pred_check_branch
      %40 = sbr.rel (0) target = $region13
    $region12: #{tpu_custom_call.1} parent=1 // pred_region
      _
    $region13: #{tpu_custom_call.1} parent=1 // pred_fallthru
      _
    // Predicated region
    $region14: #{tpu_custom_call.1} parent=1 // pred_check
      _
    $region15: #{tpu_custom_call.1} parent=1 // pred_check_branch
      %42 = sbr.rel (0) target = $region17
    $region16: #{tpu_custom_call.1} parent=1 // pred_region
      _
    $region17: #{tpu_custom_call.1} parent=1 // pred_fallthru
      _
    // Predicated region
    $region18: #{tpu_custom_call.1} parent=1 // pred_check
      _
    $region19: #{tpu_custom_call.1} parent=1 // pred_check_branch
      %44 = sbr.rel (0) target = $region21
    $region20: #{tpu_custom_call.1} parent=1 // pred_region
      _
    $region21: #{tpu_custom_call.1} parent=1 // pred_fallthru
      _
    // Predicated region
    $region22: #{tpu_custom_call.1} parent=1 // pred_check
      _
    $region23: #{tpu_custom_call.1} parent=1 // pred_check_branch
      %46 = sbr.rel (0) target = $region25
    $region24: #{tpu_custom_call.1} parent=1 // pred_region
      _
    $region25: #{tpu_custom_call.1} parent=1 // pred_fallthru
      _
    // Predicated region
    $region26: #{tpu_custom_call.1} parent=1 // pred_check
      _
    $region27: #{tpu_custom_call.1} parent=1 // pred_check_branch
      %48 = sbr.rel (0) target = $region29
    $region28: #{tpu_custom_call.1} parent=1 // pred_region
      _
    $region29: #{tpu_custom_call.1} parent=1 // pred_fallthru
      _
    // Predicated region
    $region30: #{tpu_custom_call.1} parent=1 // pred_check
      _
    $region31: #{tpu_custom_call.1} parent=1 // pred_check_branch
      %50 = sbr.rel (0) target = $region33
    $region32: #{tpu_custom_call.1} parent=1 // pred_region
      _
    $region33: #{tpu_custom_call.1} parent=1 // pred_fallthru
      _
    // Predicated region
    $region34: #{tpu_custom_call.1} parent=1 // pred_check
      _
    $region35: #{tpu_custom_call.1} parent=1 // pred_check_branch
      %52 = sbr.rel (0) target = $region37
    $region36: #{tpu_custom_call.1} parent=1 // pred_region
      _
    $region37: #{tpu_custom_call.1} parent=1 // pred_fallthru
      _
    // Predicated region
    $region38: #{tpu_custom_call.1} parent=1 // pred_check
      _
    $region39: #{tpu_custom_call.1} parent=1 // pred_check_branch
      %54 = sbr.rel (0) target = $region41
    $region40: #{tpu_custom_call.1} parent=1 // pred_region
      _
    $region41: #{tpu_custom_call.1} parent=1 // pred_fallthru
      _
    // Predicated region
    $region42: #{tpu_custom_call.1} parent=1 // pred_check
      _
    $region43: #{tpu_custom_call.1} parent=1 // pred_check_branch
      %56 = sbr.rel (0) target = $region45
    $region44: #{tpu_custom_call.1} parent=1 // pred_region
      _
    $region45: #{tpu_custom_call.1} parent=1 // pred_fallthru
      _
    // Predicated region
    $region46: #{tpu_custom_call.1} parent=1 // pred_check
      _
    $region47: #{tpu_custom_call.1} parent=1 // pred_check_branch
      %58 = sbr.rel (0) target = $region49
    $region48: #{tpu_custom_call.1} parent=1 // pred_region
      _
    $region49: #{tpu_custom_call.1} parent=1 // pred_fallthru
      _
    // Predicated region
    $region50: #{tpu_custom_call.1} parent=1 // pred_check
      _
    $region51: #{tpu_custom_call.1} parent=1 // pred_check_branch
      %60 = sbr.rel (0) target = $region53
    $region52: #{tpu_custom_call.1} parent=1 // pred_region
      _
    $region53: #{tpu_custom_call.1} parent=1 // pred_fallthru
      _
    // Predicated region
    $region54: #{tpu_custom_call.1} parent=1 // pred_check
      _
    $region55: #{tpu_custom_call.1} parent=1 // pred_check_branch
      %62 = sbr.rel (0) target = $region57
    $region56: #{tpu_custom_call.1} parent=1 // pred_region
      %63 = dma.done [#allocation7], 6272
    $region57: #{tpu_custom_call.1} parent=1 // pred_fallthru
      _
    %p65 = scmp.eq.s32.totalorder 0, 0
    // Predicated region
    $region58: #{tpu_custom_call.1} parent=1 // pred_check
      %p66 = pneg %p65
    $region59: #{tpu_custom_call.1} parent=1 // pred_check_branch
      %68 = sbr.rel (%p66) target = $region61
    $region60: #{tpu_custom_call.1} parent=1 // pred_region
      %vm69 = vcmask 0
      %70 = vst.msk [vmem:[#allocation2] sm:$0x1] %vm69, -inf
      %71 = vst.msk [vmem:[#allocation3] sm:$0x1] %vm69, 0.0
      %72 = vst [vmem:[#allocation4] sm:$0x1] 0.0
    $region61: #{tpu_custom_call.1} parent=1 // pred_fallthru
      _
    %v73 = vld [vmem:[%s0] sm:$0xff]
    %v74 = vld [vmem:[%s0 + $0x8] sm:$0xff]
    %v75 = vld [vmem:[%s0 + $0x10] sm:$0xff]
    %v76 = vld [vmem:[%s0 + $0x18] sm:$0xf]
    %v77 = vld [vmem:[%s0 + $0x1c] sm:$0xff]
    %v78 = vld [vmem:[%s0 + $0x24] sm:$0xff]
    %v79 = vld [vmem:[%s0 + $0x2c] sm:$0xff]
    %v80 = vld [vmem:[%s0 + $0x34] sm:$0xf]
    %v81 = vld [vmem:[%s0 + $0x38] sm:$0xff]
    %v82 = vld [vmem:[%s0 + $0x40] sm:$0xff]
    %v83 = vld [vmem:[%s0 + $0x48] sm:$0xff]
    %v84 = vld [vmem:[%s0 + $0x50] sm:$0xf]
    %v85 = vld [vmem:[%s0 + $0x54] sm:$0xff]
    %v86 = vld [vmem:[%s0 + $0x5c] sm:$0xff]
    %v87 = vld [vmem:[%s0 + $0x64] sm:$0xff]
    %v88 = vld [vmem:[%s0 + $0x6c] sm:$0xf]
    %v89 = vld [vmem:[%s0 + $0x70] sm:$0xff]
    %v90 = vld [vmem:[%s0 + $0x78] sm:$0xff]
    %v91 = vld [vmem:[%s0 + $0x80] sm:$0xff]
    %v92 = vld [vmem:[%s0 + $0x88] sm:$0xf]
    %v93 = vld [vmem:[%s0 + $0x8c] sm:$0xff]
    %v94 = vld [vmem:[%s0 + $0x94] sm:$0xff]
    %v95 = vld [vmem:[%s0 + $0x9c] sm:$0xff]
    %v96 = vld [vmem:[%s0 + $0xa4] sm:$0xf]
    %v97 = vld [vmem:[%s0 + $0xa8] sm:$0xff]
    %v98 = vld [vmem:[%s0 + $0xb0] sm:$0xff]
    %v99 = vld [vmem:[%s0 + $0xb8] sm:$0xff]
    %v100 = vld [vmem:[%s0 + $0xc0] sm:$0xf]
    %v101 = vld [vmem:[%s0 + $0xc4] sm:$0xff]
    %v102 = vld [vmem:[%s0 + $0xcc] sm:$0xff]
    %v103 = vld [vmem:[%s0 + $0xd4] sm:$0xff]
    %v104 = vld [vmem:[%s0 + $0xdc] sm:$0xf]
    %v105 = vld [vmem:[%s0 + $0xe0] sm:$0xff]
    %v106 = vld [vmem:[%s0 + $0xe8] sm:$0xff]
    %v107 = vld [vmem:[%s0 + $0xf0] sm:$0xff]
    %v108 = vld [vmem:[%s0 + $0xf8] sm:$0xf]
    %v109 = vld [vmem:[%s0 + $0xfc] sm:$0xff]
    %v110 = vld [vmem:[%s0 + $0x104] sm:$0xff]
    %v111 = vld [vmem:[%s0 + $0x10c] sm:$0xff]
    %v112 = vld [vmem:[%s0 + $0x114] sm:$0xf]
    %v113 = vld [vmem:[%s0 + $0x118] sm:$0xff]
    %v114 = vld [vmem:[%s0 + $0x120] sm:$0xff]
    %v115 = vld [vmem:[%s0 + $0x128] sm:$0xff]
    %v116 = vld [vmem:[%s0 + $0x130] sm:$0xf]
    %v117 = vld [vmem:[%s0 + $0x134] sm:$0xff]
    %v118 = vld [vmem:[%s0 + $0x13c] sm:$0xff]
    %v119 = vld [vmem:[%s0 + $0x144] sm:$0xff]
    %v120 = vld [vmem:[%s0 + $0x14c] sm:$0xf]
    %v121 = vld [vmem:[%s0 + $0x150] sm:$0xff]
    %v122 = vld [vmem:[%s0 + $0x158] sm:$0xff]
    %v123 = vld [vmem:[%s0 + $0x160] sm:$0xff]
    %v124 = vld [vmem:[%s0 + $0x168] sm:$0xf]
    %v125 = vld [vmem:[%s0 + $0x16c] sm:$0xff]
    %v126 = vld [vmem:[%s0 + $0x174] sm:$0xff]
    %v127 = vld [vmem:[%s0 + $0x17c] sm:$0xff]
    %v128 = vld [vmem:[%s0 + $0x184] sm:$0xf]
    %v129 = vld [vmem:[%s0 + $0x188] sm:$0xff]
    %v130 = vld [vmem:[%s0 + $0x190] sm:$0xff]
    %v131 = vld [vmem:[%s0 + $0x198] sm:$0xff]
    %v132 = vld [vmem:[%s0 + $0x1a0] sm:$0xf]
    %v133 = vld [vmem:[%s0 + $0x1a4] sm:$0xff]
    %v134 = vld [vmem:[%s0 + $0x1ac] sm:$0xff]
    %v135 = vld [vmem:[%s0 + $0x1b4] sm:$0xff]
    %v136 = vld [vmem:[%s0 + $0x1bc] sm:$0xf]
    %v137 = vld [vmem:[#allocation6] sm:$0xf]
    %v138 = vld [vmem:[#allocation6 + $0x4] sm:$0xf]
    %v139 = vld [vmem:[#allocation6 + $0x8] sm:$0xf]
    %v140 = vld [vmem:[#allocation6 + $0xc] sm:$0xf]
    %v141 = vld [vmem:[#allocation6 + $0x10] sm:$0xf]
    %v142 = vld [vmem:[#allocation6 + $0x14] sm:$0xf]
    %v143 = vld [vmem:[#allocation6 + $0x18] sm:$0xf]
    %v144 = vld [vmem:[#allocation6 + $0x1c] sm:$0xf]
    %v145 = vld [vmem:[#allocation6 + $0x20] sm:$0xf]
    %v146 = vld [vmem:[#allocation6 + $0x24] sm:$0xf]
    %v147 = vld [vmem:[#allocation6 + $0x28] sm:$0xf]
    %v148 = vld [vmem:[#allocation6 + $0x2c] sm:$0xf]
    %v149 = vld [vmem:[#allocation6 + $0x30] sm:$0xf]
    %v150 = vld [vmem:[#allocation6 + $0x34] sm:$0xf]
    %v151 = vld [vmem:[#allocation6 + $0x38] sm:$0xf]
    %v152 = vld [vmem:[#allocation6 + $0x3c] sm:$0xf]
    %v153 = vld [vmem:[#allocation6 + $0x40] sm:$0xf]
    %v154 = vld [vmem:[#allocation6 + $0x44] sm:$0xf]
    %v155 = vld [vmem:[#allocation6 + $0x48] sm:$0xf]
    %v156 = vld [vmem:[#allocation6 + $0x4c] sm:$0xf]
    %v157 = vld [vmem:[#allocation6 + $0x50] sm:$0xf]
    %v158 = vld [vmem:[#allocation6 + $0x54] sm:$0xf]
    %v159 = vld [vmem:[#allocation6 + $0x58] sm:$0xf]
    %v160 = vld [vmem:[#allocation6 + $0x5c] sm:$0xf]
    %v161 = vld [vmem:[#allocation6 + $0x60] sm:$0xf]
    %v162 = vld [vmem:[#allocation6 + $0x64] sm:$0xf]
    %v163 = vld [vmem:[#allocation6 + $0x68] sm:$0xf]
    %v164 = vld [vmem:[#allocation6 + $0x6c] sm:$0xf]
    %v165 = vld [vmem:[#allocation6 + $0x70] sm:$0xf]
    %v166 = vld [vmem:[#allocation6 + $0x74] sm:$0xf]
    %v167 = vld [vmem:[#allocation6 + $0x78] sm:$0xf]
    %v168 = vld [vmem:[#allocation6 + $0x7c] sm:$0xf]
    %v169 = vld [vmem:[#allocation6 + $0x80] sm:$0xf]
    %v170 = vld [vmem:[#allocation6 + $0x84] sm:$0xf]
    %v171 = vld [vmem:[#allocation6 + $0x88] sm:$0xf]
    %v172 = vld [vmem:[#allocation6 + $0x8c] sm:$0xf]
    %v173 = vld [vmem:[#allocation6 + $0x90] sm:$0xf]
    %v174 = vld [vmem:[#allocation6 + $0x94] sm:$0xf]
    %v175 = vld [vmem:[#allocation6 + $0x98] sm:$0xf]
    %v176 = vld [vmem:[#allocation6 + $0x9c] sm:$0xf]
    %v177 = vld [vmem:[#allocation6 + $0xa0] sm:$0xf]
    %v178 = vld [vmem:[#allocation6 + $0xa4] sm:$0xf]
    %v179 = vld [vmem:[#allocation6 + $0xa8] sm:$0xf]
    %v180 = vld [vmem:[#allocation6 + $0xac] sm:$0xf]
    %v181 = vld [vmem:[#allocation6 + $0xb0] sm:$0xf]
    %v182 = vld [vmem:[#allocation6 + $0xb4] sm:$0xf]
    %v183 = vld [vmem:[#allocation6 + $0xb8] sm:$0xf]
    %v184 = vld [vmem:[#allocation6 + $0xbc] sm:$0xf]
    %v185 = vld [vmem:[#allocation6 + $0xc0] sm:$0xf]
    %v186 = vld [vmem:[#allocation6 + $0xc4] sm:$0xf]
    %v187 = vld [vmem:[#allocation6 + $0xc8] sm:$0xf]
    %v188 = vld [vmem:[#allocation6 + $0xcc] sm:$0xf]
    %v189 = vld [vmem:[#allocation6 + $0xd0] sm:$0xf]
    %v190 = vld [vmem:[#allocation6 + $0xd4] sm:$0xf]
    %v191 = vld [vmem:[#allocation6 + $0xd8] sm:$0xf]
    %v192 = vld [vmem:[#allocation6 + $0xdc] sm:$0xf]
    %v193 = vld [vmem:[#allocation6 + $0xe0] sm:$0xf]
    %v194 = vld [vmem:[#allocation6 + $0xe4] sm:$0xf]
    %v195 = vld [vmem:[#allocation6 + $0xe8] sm:$0xf]
    %v196 = vld [vmem:[#allocation6 + $0xec] sm:$0xf]
    %v197 = vld [vmem:[#allocation6 + $0xf0] sm:$0xf]
    %v198 = vld [vmem:[#allocation6 + $0xf4] sm:$0xf]
    %v199 = vld [vmem:[#allocation6 + $0xf8] sm:$0xf]
    %v200 = vld [vmem:[#allocation6 + $0xfc] sm:$0xf]
    %v201 = vld [vmem:[#allocation6 + $0x100] sm:$0xf]
    %v202 = vld [vmem:[#allocation6 + $0x104] sm:$0xf]
    %v203 = vld [vmem:[#allocation6 + $0x108] sm:$0xf]
    %v204 = vld [vmem:[#allocation6 + $0x10c] sm:$0xf]
    %v205 = vld [vmem:[#allocation6 + $0x110] sm:$0xf]
    %v206 = vld [vmem:[#allocation6 + $0x114] sm:$0xf]
    %v207 = vld [vmem:[#allocation6 + $0x118] sm:$0xf]
    %v208 = vld [vmem:[#allocation6 + $0x11c] sm:$0xf]
    %v209 = vld [vmem:[#allocation6 + $0x120] sm:$0xf]
    %v210 = vld [vmem:[#allocation6 + $0x124] sm:$0xf]
    %v211 = vld [vmem:[#allocation6 + $0x128] sm:$0xf]
    %v212 = vld [vmem:[#allocation6 + $0x12c] sm:$0xf]
    %v213 = vld [vmem:[#allocation6 + $0x130] sm:$0xf]
    %v214 = vld [vmem:[#allocation6 + $0x134] sm:$0xf]
    %v215 = vld [vmem:[#allocation6 + $0x138] sm:$0xf]
    %v216 = vld [vmem:[#allocation6 + $0x13c] sm:$0xf]
    %v217 = vld [vmem:[#allocation6 + $0x140] sm:$0xf]
    %v218 = vld [vmem:[#allocation6 + $0x144] sm:$0xf]
    %v219 = vld [vmem:[#allocation6 + $0x148] sm:$0xf]
    %v220 = vld [vmem:[#allocation6 + $0x14c] sm:$0xf]
    %v221 = vld [vmem:[#allocation6 + $0x150] sm:$0xf]
    %v222 = vld [vmem:[#allocation6 + $0x154] sm:$0xf]
    %v223 = vld [vmem:[#allocation6 + $0x158] sm:$0xf]
    %v224 = vld [vmem:[#allocation6 + $0x15c] sm:$0xf]
    %v225 = vld [vmem:[#allocation6 + $0x160] sm:$0xf]
    %v226 = vld [vmem:[#allocation6 + $0x164] sm:$0xf]
    %v227 = vld [vmem:[#allocation6 + $0x168] sm:$0xf]
    %v228 = vld [vmem:[#allocation6 + $0x16c] sm:$0xf]
    %v229 = vld [vmem:[#allocation6 + $0x170] sm:$0xf]
    %v230 = vld [vmem:[#allocation6 + $0x174] sm:$0xf]
    %v231 = vld [vmem:[#allocation6 + $0x178] sm:$0xf]
    %v232 = vld [vmem:[#allocation6 + $0x17c] sm:$0xf]
    %v233 = vld [vmem:[#allocation6 + $0x180] sm:$0xf]
    %v234 = vld [vmem:[#allocation6 + $0x184] sm:$0xf]
    %v235 = vld [vmem:[%s2] sm:$0x1]
    %v237 = vlaneseq
    %v238 = vshrl.u32 %v237, 7
    %v239 = vsub.s32 0, %v238
    %v240 = vrot.slane %v235, %v239
    %v306 = vunpack.c.l.b16 %v73
    %v307 = vunpack.c.h.b16 %v73
    %v308 = vunpack.c.l.b16 %v74
    %v309 = vunpack.c.h.b16 %v74
    %v310 = vunpack.c.l.b16 %v75
    %v311 = vunpack.c.h.b16 %v75
    %v312 = vunpack.c.l.b16 %v76
    %v313 = vunpack.c.l.b16 %v77
    %v314 = vunpack.c.h.b16 %v77
    %v315 = vunpack.c.l.b16 %v78
    %v316 = vunpack.c.h.b16 %v78
    %v317 = vunpack.c.l.b16 %v79
    %v318 = vunpack.c.h.b16 %v79
    %v319 = vunpack.c.l.b16 %v80
    %v320 = vunpack.c.l.b16 %v81
    %v321 = vunpack.c.h.b16 %v81
    %v322 = vunpack.c.l.b16 %v82
    %v323 = vunpack.c.h.b16 %v82
    %v324 = vunpack.c.l.b16 %v83
    %v325 = vunpack.c.h.b16 %v83
    %v326 = vunpack.c.l.b16 %v84
    %v327 = vunpack.c.l.b16 %v85
    %v328 = vunpack.c.h.b16 %v85
    %v329 = vunpack.c.l.b16 %v86
    %v330 = vunpack.c.h.b16 %v86
    %v331 = vunpack.c.l.b16 %v87
    %v332 = vunpack.c.h.b16 %v87
    %v333 = vunpack.c.l.b16 %v88
    %v334 = vunpack.c.l.b16 %v89
    %v335 = vunpack.c.h.b16 %v89
    %v336 = vunpack.c.l.b16 %v90
    %v337 = vunpack.c.h.b16 %v90
    %v338 = vunpack.c.l.b16 %v91
    %v339 = vunpack.c.h.b16 %v91
    %v340 = vunpack.c.l.b16 %v92
    %v341 = vunpack.c.l.b16 %v93
    %v342 = vunpack.c.h.b16 %v93
    %v343 = vunpack.c.l.b16 %v94
    %v344 = vunpack.c.h.b16 %v94
    %v345 = vunpack.c.l.b16 %v95
    %v346 = vunpack.c.h.b16 %v95
    %v347 = vunpack.c.l.b16 %v96
    %v348 = vunpack.c.l.b16 %v97
    %v349 = vunpack.c.h.b16 %v97
    %v350 = vunpack.c.l.b16 %v98
    %v351 = vunpack.c.h.b16 %v98
    %v352 = vunpack.c.l.b16 %v99
    %v353 = vunpack.c.h.b16 %v99
    %v354 = vunpack.c.l.b16 %v100
    %v355 = vunpack.c.l.b16 %v101
    %v356 = vunpack.c.h.b16 %v101
    %v357 = vunpack.c.l.b16 %v102
    %v358 = vunpack.c.h.b16 %v102
    %v359 = vunpack.c.l.b16 %v103
    %v360 = vunpack.c.h.b16 %v103
    %v361 = vunpack.c.l.b16 %v104
    %v362 = vunpack.c.l.b16 %v105
    %v363 = vunpack.c.h.b16 %v105
    %v364 = vunpack.c.l.b16 %v106
    %v365 = vunpack.c.h.b16 %v106
    %v366 = vunpack.c.l.b16 %v107
    %v367 = vunpack.c.h.b16 %v107
    %v368 = vunpack.c.l.b16 %v108
    %v369 = vunpack.c.l.b16 %v109
    %v370 = vunpack.c.h.b16 %v109
    %v371 = vunpack.c.l.b16 %v110
    %v372 = vunpack.c.h.b16 %v110
    %v373 = vunpack.c.l.b16 %v111
    %v374 = vunpack.c.h.b16 %v111
    %v375 = vunpack.c.l.b16 %v112
    %v376 = vunpack.c.l.b16 %v113
    %v377 = vunpack.c.h.b16 %v113
    %v378 = vunpack.c.l.b16 %v114
    %v379 = vunpack.c.h.b16 %v114
    %v380 = vunpack.c.l.b16 %v115
    %v381 = vunpack.c.h.b16 %v115
    %v382 = vunpack.c.l.b16 %v116
    %v383 = vunpack.c.l.b16 %v117
    %v384 = vunpack.c.h.b16 %v117
    %v385 = vunpack.c.l.b16 %v118
    %v386 = vunpack.c.h.b16 %v118
    %v387 = vunpack.c.l.b16 %v119
    %v388 = vunpack.c.h.b16 %v119
    %v389 = vunpack.c.l.b16 %v120
    %v390 = vunpack.c.l.b16 %v121
    %v391 = vunpack.c.h.b16 %v121
    %v392 = vunpack.c.l.b16 %v122
    %v393 = vunpack.c.h.b16 %v122
    %v394 = vunpack.c.l.b16 %v123
    %v395 = vunpack.c.h.b16 %v123
    %v396 = vunpack.c.l.b16 %v124
    %v397 = vunpack.c.l.b16 %v125
    %v398 = vunpack.c.h.b16 %v125
    %v399 = vunpack.c.l.b16 %v126
    %v400 = vunpack.c.h.b16 %v126
    %v401 = vunpack.c.l.b16 %v127
    %v402 = vunpack.c.h.b16 %v127
    %v403 = vunpack.c.l.b16 %v128
    %v404 = vunpack.c.l.b16 %v129
    %v405 = vunpack.c.h.b16 %v129
    %v406 = vunpack.c.l.b16 %v130
    %v407 = vunpack.c.h.b16 %v130
    %v408 = vunpack.c.l.b16 %v131
    %v409 = vunpack.c.h.b16 %v131
    %v410 = vunpack.c.l.b16 %v132
    %v411 = vunpack.c.l.b16 %v133
    %v412 = vunpack.c.h.b16 %v133
    %v413 = vunpack.c.l.b16 %v134
    %v414 = vunpack.c.h.b16 %v134
    %v415 = vunpack.c.l.b16 %v135
    %v416 = vunpack.c.h.b16 %v135
    %v417 = vunpack.c.l.b16 %v136
    %v418 = vpack.c.b16 %v313, %v306
    %v419 = vpack.c.b16 %v314, %v307
    %v420 = vpack.c.b16 %v315, %v308
    %v421 = vpack.c.b16 %v316, %v309
    %v422 = vpack.c.b16 %v317, %v310
    %v423 = vpack.c.b16 %v318, %v311
    %v424 = vpack.c.b16 %v319, %v312
    %v425 = vpack.c.b16 %v327, %v320
    %v426 = vpack.c.b16 %v328, %v321
    %v427 = vpack.c.b16 %v329, %v322
    %v428 = vpack.c.b16 %v330, %v323
    %v429 = vpack.c.b16 %v331, %v324
    %v430 = vpack.c.b16 %v332, %v325
    %v431 = vpack.c.b16 %v333, %v326
    %v432 = vpack.c.b16 %v341, %v334
    %v433 = vpack.c.b16 %v342, %v335
    %v434 = vpack.c.b16 %v343, %v336
    %v435 = vpack.c.b16 %v344, %v337
    %v436 = vpack.c.b16 %v345, %v338
    %v437 = vpack.c.b16 %v346, %v339
    %v438 = vpack.c.b16 %v347, %v340
    %v439 = vpack.c.b16 %v355, %v348
    %v440 = vpack.c.b16 %v356, %v349
    %v441 = vpack.c.b16 %v357, %v350
    %v442 = vpack.c.b16 %v358, %v351
    %v443 = vpack.c.b16 %v359, %v352
    %v444 = vpack.c.b16 %v360, %v353
    %v445 = vpack.c.b16 %v361, %v354
    %v446 = vpack.c.b16 %v369, %v362
    %v447 = vpack.c.b16 %v370, %v363
    %v448 = vpack.c.b16 %v371, %v364
    %v449 = vpack.c.b16 %v372, %v365
    %v450 = vpack.c.b16 %v373, %v366
    %v451 = vpack.c.b16 %v374, %v367
    %v452 = vpack.c.b16 %v375, %v368
    %v453 = vpack.c.b16 %v383, %v376
    %v454 = vpack.c.b16 %v384, %v377
    %v455 = vpack.c.b16 %v385, %v378
    %v456 = vpack.c.b16 %v386, %v379
    %v457 = vpack.c.b16 %v387, %v380
    %v458 = vpack.c.b16 %v388, %v381
    %v459 = vpack.c.b16 %v389, %v382
    %v460 = vpack.c.b16 %v397, %v390
    %v461 = vpack.c.b16 %v398, %v391
    %v462 = vpack.c.b16 %v399, %v392
    %v463 = vpack.c.b16 %v400, %v393
    %v464 = vpack.c.b16 %v401, %v394
    %v465 = vpack.c.b16 %v402, %v395
    %v466 = vpack.c.b16 %v403, %v396
    %v467 = vpack.c.b16 %v411, %v404
    %v468 = vpack.c.b16 %v412, %v405
    %v469 = vpack.c.b16 %v413, %v406
    %v470 = vpack.c.b16 %v414, %v407
    %v471 = vpack.c.b16 %v415, %v408
    %v472 = vpack.c.b16 %v416, %v409
    %v473 = vpack.c.b16 %v417, %v410
    %v620 = vunpack.c.l.b16 %v137
    %v621 = vunpack.c.l.b16 %v138
    %v622 = vunpack.c.l.b16 %v139
    %v623 = vunpack.c.l.b16 %v140
    %v624 = vunpack.c.l.b16 %v141
    %v625 = vunpack.c.l.b16 %v142
    %v626 = vunpack.c.l.b16 %v143
    %v627 = vunpack.c.l.b16 %v144
    %v628 = vunpack.c.l.b16 %v145
    %v629 = vunpack.c.l.b16 %v146
    %v630 = vunpack.c.l.b16 %v147
    %v631 = vunpack.c.l.b16 %v148
    %v632 = vunpack.c.l.b16 %v149
    %v633 = vunpack.c.l.b16 %v150
    %v634 = vunpack.c.l.b16 %v151
    %v635 = vunpack.c.l.b16 %v152
    %v636 = vunpack.c.l.b16 %v153
    %v637 = vunpack.c.l.b16 %v154
    %v638 = vunpack.c.l.b16 %v155
    %v639 = vunpack.c.l.b16 %v156
    %v640 = vunpack.c.l.b16 %v157
    %v641 = vunpack.c.l.b16 %v158
    %v642 = vunpack.c.l.b16 %v159
    %v643 = vunpack.c.l.b16 %v160
    %v644 = vunpack.c.l.b16 %v161
    %v645 = vunpack.c.l.b16 %v162
    %v646 = vunpack.c.l.b16 %v163
    %v647 = vunpack.c.l.b16 %v164
    %v648 = vunpack.c.l.b16 %v165
    %v649 = vunpack.c.l.b16 %v166
    %v650 = vunpack.c.l.b16 %v167
    %v651 = vunpack.c.l.b16 %v168
    %v652 = vunpack.c.l.b16 %v169
    %v653 = vunpack.c.l.b16 %v170
    %v654 = vunpack.c.l.b16 %v171
    %v655 = vunpack.c.l.b16 %v172
    %v656 = vunpack.c.l.b16 %v173
    %v657 = vunpack.c.l.b16 %v174
    %v658 = vunpack.c.l.b16 %v175
    %v659 = vunpack.c.l.b16 %v176
    %v660 = vunpack.c.l.b16 %v177
    %v661 = vunpack.c.l.b16 %v178
    %v662 = vunpack.c.l.b16 %v179
    %v663 = vunpack.c.l.b16 %v180
    %v664 = vunpack.c.l.b16 %v181
    %v665 = vunpack.c.l.b16 %v182
    %v666 = vunpack.c.l.b16 %v183
    %v667 = vunpack.c.l.b16 %v184
    %v668 = vunpack.c.l.b16 %v185
    %v669 = vunpack.c.l.b16 %v186
    %v670 = vunpack.c.l.b16 %v187
    %v671 = vunpack.c.l.b16 %v188
    %v672 = vunpack.c.l.b16 %v189
    %v673 = vunpack.c.l.b16 %v190
    %v674 = vunpack.c.l.b16 %v191
    %v675 = vunpack.c.l.b16 %v192
    %v676 = vunpack.c.l.b16 %v193
    %v677 = vunpack.c.l.b16 %v194
    %v678 = vunpack.c.l.b16 %v195
    %v679 = vunpack.c.l.b16 %v196
    %v680 = vunpack.c.l.b16 %v197
    %v681 = vunpack.c.l.b16 %v198
    %v682 = vunpack.c.l.b16 %v199
    %v683 = vunpack.c.l.b16 %v200
    %v684 = vunpack.c.l.b16 %v201
    %v685 = vunpack.c.l.b16 %v202
    %v686 = vunpack.c.l.b16 %v203
    %v687 = vunpack.c.l.b16 %v204
    %v688 = vunpack.c.l.b16 %v205
    %v689 = vunpack.c.l.b16 %v206
    %v690 = vunpack.c.l.b16 %v207
    %v691 = vunpack.c.l.b16 %v208
    %v692 = vunpack.c.l.b16 %v209
    %v693 = vunpack.c.l.b16 %v210
    %v694 = vunpack.c.l.b16 %v211
    %v695 = vunpack.c.l.b16 %v212
    %v696 = vunpack.c.l.b16 %v213
    %v697 = vunpack.c.l.b16 %v214
    %v698 = vunpack.c.l.b16 %v215
    %v699 = vunpack.c.l.b16 %v216
    %v700 = vunpack.c.l.b16 %v217
    %v701 = vunpack.c.l.b16 %v218
    %v702 = vunpack.c.l.b16 %v219
    %v703 = vunpack.c.l.b16 %v220
    %v704 = vunpack.c.l.b16 %v221
    %v705 = vunpack.c.l.b16 %v222
    %v706 = vunpack.c.l.b16 %v223
    %v707 = vunpack.c.l.b16 %v224
    %v708 = vunpack.c.l.b16 %v225
    %v709 = vunpack.c.l.b16 %v226
    %v710 = vunpack.c.l.b16 %v227
    %v711 = vunpack.c.l.b16 %v228
    %v712 = vunpack.c.l.b16 %v229
    %v713 = vunpack.c.l.b16 %v230
    %v714 = vunpack.c.l.b16 %v231
    %v715 = vunpack.c.l.b16 %v232
    %v716 = vunpack.c.l.b16 %v233
    %v717 = vunpack.c.l.b16 %v234
    %v718 = vpack.c.b16 %v621, %v620
    %v719 = vpack.c.b16 %v623, %v622
    %v720 = vpack.c.b16 %v625, %v624
    %v721 = vpack.c.b16 %v627, %v626
    %v722 = vpack.c.b16 %v629, %v628
    %v723 = vpack.c.b16 %v631, %v630
    %v724 = vpack.c.b16 %v633, %v632
    %v725 = vpack.c.b16 %v635, %v634
    %v726 = vpack.c.b16 %v637, %v636
    %v727 = vpack.c.b16 %v639, %v638
    %v728 = vpack.c.b16 %v641, %v640
    %v729 = vpack.c.b16 %v643, %v642
    %v730 = vpack.c.b16 %v645, %v644
    %v731 = vpack.c.b16 %v647, %v646
    %v732 = vpack.c.b16 %v649, %v648
    %v733 = vpack.c.b16 %v651, %v650
    %v734 = vpack.c.b16 %v653, %v652
    %v735 = vpack.c.b16 %v655, %v654
    %v736 = vpack.c.b16 %v657, %v656
    %v737 = vpack.c.b16 %v659, %v658
    %v738 = vpack.c.b16 %v661, %v660
    %v739 = vpack.c.b16 %v663, %v662
    %v740 = vpack.c.b16 %v665, %v664
    %v741 = vpack.c.b16 %v667, %v666
    %v742 = vpack.c.b16 %v669, %v668
    %v743 = vpack.c.b16 %v671, %v670
    %v744 = vpack.c.b16 %v673, %v672
    %v745 = vpack.c.b16 %v675, %v674
    %v746 = vpack.c.b16 %v677, %v676
    %v747 = vpack.c.b16 %v679, %v678
    %v748 = vpack.c.b16 %v681, %v680
    %v749 = vpack.c.b16 %v683, %v682
    %v750 = vpack.c.b16 %v685, %v684
    %v751 = vpack.c.b16 %v687, %v686
    %v752 = vpack.c.b16 %v689, %v688
    %v753 = vpack.c.b16 %v691, %v690
    %v754 = vpack.c.b16 %v693, %v692
    %v755 = vpack.c.b16 %v695, %v694
    %v756 = vpack.c.b16 %v697, %v696
    %v757 = vpack.c.b16 %v699, %v698
    %v758 = vpack.c.b16 %v701, %v700
    %v759 = vpack.c.b16 %v703, %v702
    %v760 = vpack.c.b16 %v705, %v704
    %v761 = vpack.c.b16 %v707, %v706
    %v762 = vpack.c.b16 %v709, %v708
    %v763 = vpack.c.b16 %v711, %v710
    %v764 = vpack.c.b16 %v713, %v712
    %v765 = vpack.c.b16 %v715, %v714
    %v766 = vpack.c.b16 %v717, %v716
    %vm816 = vcmask 130048
    %v818 = vsel %vm816, %v424, 0
    %v821 = vsel %vm816, %v431, 0
    %v824 = vsel %vm816, %v438, 0
    %v827 = vsel %vm816, %v445, 0
    %v830 = vsel %vm816, %v452, 0
    %v833 = vsel %vm816, %v459, 0
    %v836 = vsel %vm816, %v466, 0
    %v839 = vsel %vm816, %v473, 0
    %841 = vmatprep.subr.bf16.mxu0 0
    %842 = vmatpush1.bf16.msra.mxu0 %v718
    %843 = vmatprep.subr.bf16.mxu0 0
    %844 = vmatpush1.bf16.msra.mxu0 %v719
    %845 = vmatprep.subr.bf16.mxu0 0
    %846 = vmatpush1.bf16.msra.mxu0 %v720
    %847 = vmatprep.subr.bf16.mxu0 0
    %848 = vmatpush1.bf16.msra.mxu0 %v721
    %849 = vmatprep.subr.bf16.mxu0 0
    %850 = vmatpush1.bf16.msra.mxu0 %v722
    %851 = vmatprep.subr.bf16.mxu0 0
    %852 = vmatpush1.bf16.msra.mxu0 %v723
    %853 = vmatprep.subr.bf16.mxu0 0
    %854 = vmatpush1.bf16.msra.mxu0 %v724
    %855 = vmatprep.subr.bf16.mxu0 0
    %856 = vmatpush1.bf16.msra.mxu0 %v725
    %857 = vmatprep.subr.bf16.mxu0 0
    %858 = vmatpush1.bf16.msra.mxu0 %v726
    %859 = vmatprep.subr.bf16.mxu0 0
    %860 = vmatpush1.bf16.msra.mxu0 %v727
    %861 = vmatprep.subr.bf16.mxu0 0
    %862 = vmatpush1.bf16.msra.mxu0 %v728
    %863 = vmatprep.subr.bf16.mxu0 0
    %864 = vmatpush1.bf16.msra.mxu0 %v729
    %865 = vmatprep.subr.bf16.mxu0 0
    %866 = vmatpush1.bf16.msra.mxu0 %v730
    %867 = vmatprep.subr.bf16.mxu0 0
    %868 = vmatpush1.bf16.msra.mxu0 %v731
    %869 = vmatprep.subr.bf16.mxu0 0
    %870 = vmatpush1.bf16.msra.mxu0 %v732
    %871 = vmatprep.subr.bf16.mxu0 0
    %872 = vmatpush1.bf16.msra.mxu0 %v733
    %873 = vmatprep.mubr.bf16.mxu0 %v419
    %874 = vmatmul.mubr.bf16.gmra.mrb[0].mxu0 %v418
    %v875 = vpop.f32.mrb[0].mxu0
    %v876 = vadd.f32 %v240, %v875
    %v877 = vpop.f32.mrb[0].mxu0
    %v878 = vpop.f32.mrb[0].mxu0
    %v879 = vadd.f32 %v240, %v878
    %v880 = vpop.f32.mrb[0].mxu0
    %881 = vmatprep.mubr.bf16.mxu0 %v426
    %882 = vmatmul.mubr.bf16.gmra.mrb[0].mxu0 %v425
    %v883 = vpop.f32.mrb[0].mxu0
    %v884 = vadd.f32 %v240, %v883
    %v885 = vpop.f32.mrb[0].mxu0
    %v886 = vpop.f32.mrb[0].mxu0
    %v887 = vadd.f32 %v240, %v886
    %v888 = vpop.f32.mrb[0].mxu0
    %889 = vmatprep.mubr.bf16.mxu0 %v433
    %890 = vmatmul.mubr.bf16.gmra.mrb[0].mxu0 %v432
    %v891 = vpop.f32.mrb[0].mxu0
    %v892 = vadd.f32 %v240, %v891
    %v893 = vpop.f32.mrb[0].mxu0
    %v894 = vpop.f32.mrb[0].mxu0
    %v895 = vadd.f32 %v240, %v894
    %v896 = vpop.f32.mrb[0].mxu0
    %897 = vmatprep.mubr.bf16.mxu0 %v440
    %898 = vmatmul.mubr.bf16.gmra.mrb[0].mxu0 %v439
    %v899 = vpop.f32.mrb[0].mxu0
    %v900 = vadd.f32 %v240, %v899
    %v901 = vpop.f32.mrb[0].mxu0
    %v902 = vpop.f32.mrb[0].mxu0
    %v903 = vadd.f32 %v240, %v902
    %v904 = vpop.f32.mrb[0].mxu0
    %905 = vmatprep.mubr.bf16.mxu0 %v447
    %906 = vmatmul.mubr.bf16.gmra.mrb[0].mxu0 %v446
    %v907 = vpop.f32.mrb[0].mxu0
    %v908 = vadd.f32 %v240, %v907
    %v909 = vpop.f32.mrb[0].mxu0
    %v910 = vpop.f32.mrb[0].mxu0
    %v911 = vadd.f32 %v240, %v910
    %v912 = vpop.f32.mrb[0].mxu0
    %913 = vmatprep.mubr.bf16.mxu0 %v454
    %914 = vmatmul.mubr.bf16.gmra.mrb[0].mxu0 %v453
    %v915 = vpop.f32.mrb[0].mxu0
    %v916 = vadd.f32 %v240, %v915
    %v917 = vpop.f32.mrb[0].mxu0
    %v918 = vpop.f32.mrb[0].mxu0
    %v919 = vadd.f32 %v240, %v918
    %v920 = vpop.f32.mrb[0].mxu0
    %921 = vmatprep.mubr.bf16.mxu0 %v461
    %922 = vmatmul.mubr.bf16.gmra.mrb[0].mxu0 %v460
    %v923 = vpop.f32.mrb[0].mxu0
    %v924 = vadd.f32 %v240, %v923
    %v925 = vpop.f32.mrb[0].mxu0
    %v926 = vpop.f32.mrb[0].mxu0
    %v927 = vadd.f32 %v240, %v926
    %v928 = vpop.f32.mrb[0].mxu0
    %929 = vmatprep.mubr.bf16.mxu0 %v468
    %930 = vmatmul.mubr.bf16.gmra.mrb[0].mxu0 %v467
    %v931 = vpop.f32.mrb[0].mxu0
    %v932 = vadd.f32 %v240, %v931
    %v933 = vpop.f32.mrb[0].mxu0
    %v934 = vpop.f32.mrb[0].mxu0
    %v935 = vadd.f32 %v240, %v934
    %v936 = vpop.f32.mrb[0].mxu0
    %937 = vdwg.mxu0
    %938 = vmatprep.subr.bf16.mxu0 0
    %939 = vmatpush1.bf16.msra.mxu0 %v734
    %940 = vmatprep.subr.bf16.mxu0 0
    %941 = vmatpush1.bf16.msra.mxu0 %v735
    %942 = vmatprep.subr.bf16.mxu0 0
    %943 = vmatpush1.bf16.msra.mxu0 %v736
    %944 = vmatprep.subr.bf16.mxu0 0
    %945 = vmatpush1.bf16.msra.mxu0 %v737
    %946 = vmatprep.subr.bf16.mxu0 0
    %947 = vmatpush1.bf16.msra.mxu0 %v738
    %948 = vmatprep.subr.bf16.mxu0 0
    %949 = vmatpush1.bf16.msra.mxu0 %v739
    %950 = vmatprep.subr.bf16.mxu0 0
    %951 = vmatpush1.bf16.msra.mxu0 %v740
    %952 = vmatprep.subr.bf16.mxu0 0
    %953 = vmatpush1.bf16.msra.mxu0 %v741
    %954 = vmatprep.subr.bf16.mxu0 0
    %955 = vmatpush1.bf16.msra.mxu0 %v742
    %956 = vmatprep.subr.bf16.mxu0 0
    %957 = vmatpush1.bf16.msra.mxu0 %v743
    %958 = vmatprep.subr.bf16.mxu0 0
    %959 = vmatpush1.bf16.msra.mxu0 %v744
    %960 = vmatprep.subr.bf16.mxu0 0
    %961 = vmatpush1.bf16.msra.mxu0 %v745
    %962 = vmatprep.subr.bf16.mxu0 0
    %963 = vmatpush1.bf16.msra.mxu0 %v746
    %964 = vmatprep.subr.bf16.mxu0 0
    %965 = vmatpush1.bf16.msra.mxu0 %v747
    %966 = vmatprep.subr.bf16.mxu0 0
    %967 = vmatpush1.bf16.msra.mxu0 %v748
    %968 = vmatprep.subr.bf16.mxu0 0
    %969 = vmatpush1.bf16.msra.mxu0 %v749
    %970 = vmatprep.mubr.bf16.mxu0 %v421
    %971 = vmatmul.mubr.bf16.gmra.mrb[0].mxu0 %v420
    %v972 = vpop.f32.mrb[0].mxu0
    %v973 = vadd.f32 %v876, %v972
    %v974 = vpop.f32.mrb[0].mxu0
    %v975 = vpop.f32.mrb[0].mxu0
    %v976 = vadd.f32 %v879, %v975
    %v977 = vpop.f32.mrb[0].mxu0
    %978 = vmatprep.mubr.bf16.mxu0 %v428
    %979 = vmatmul.mubr.bf16.gmra.mrb[0].mxu0 %v427
    %v980 = vpop.f32.mrb[0].mxu0
    %v981 = vadd.f32 %v884, %v980
    %v982 = vpop.f32.mrb[0].mxu0
    %v983 = vpop.f32.mrb[0].mxu0
    %v984 = vadd.f32 %v887, %v983
    %v985 = vpop.f32.mrb[0].mxu0
    %986 = vmatprep.mubr.bf16.mxu0 %v435
    %987 = vmatmul.mubr.bf16.gmra.mrb[0].mxu0 %v434
    %v988 = vpop.f32.mrb[0].mxu0
    %v989 = vadd.f32 %v892, %v988
    %v990 = vpop.f32.mrb[0].mxu0
    %v991 = vpop.f32.mrb[0].mxu0
    %v992 = vadd.f32 %v895, %v991
    %v993 = vpop.f32.mrb[0].mxu0
    %994 = vmatprep.mubr.bf16.mxu0 %v442
    %995 = vmatmul.mubr.bf16.gmra.mrb[0].mxu0 %v441
    %v996 = vpop.f32.mrb[0].mxu0
    %v997 = vadd.f32 %v900, %v996
    %v998 = vpop.f32.mrb[0].mxu0
    %v999 = vpop.f32.mrb[0].mxu0
    %v1000 = vadd.f32 %v903, %v999
    %v1001 = vpop.f32.mrb[0].mxu0
    %1002 = vmatprep.mubr.bf16.mxu0 %v449
    %1003 = vmatmul.mubr.bf16.gmra.mrb[0].mxu0 %v448
    %v1004 = vpop.f32.mrb[0].mxu0
    %v1005 = vadd.f32 %v908, %v1004
    %v1006 = vpop.f32.mrb[0].mxu0
    %v1007 = vpop.f32.mrb[0].mxu0
    %v1008 = vadd.f32 %v911, %v1007
    %v1009 = vpop.f32.mrb[0].mxu0
    %1010 = vmatprep.mubr.bf16.mxu0 %v456
    %1011 = vmatmul.mubr.bf16.gmra.mrb[0].mxu0 %v455
    %v1012 = vpop.f32.mrb[0].mxu0
    %v1013 = vadd.f32 %v916, %v1012
    %v1014 = vpop.f32.mrb[0].mxu0
    %v1015 = vpop.f32.mrb[0].mxu0
    %v1016 = vadd.f32 %v919, %v1015
    %v1017 = vpop.f32.mrb[0].mxu0
    %1018 = vmatprep.mubr.bf16.mxu0 %v463
    %1019 = vmatmul.mubr.bf16.gmra.mrb[0].mxu0 %v462
    %v1020 = vpop.f32.mrb[0].mxu0
    %v1021 = vadd.f32 %v924, %v1020
    %v1022 = vpop.f32.mrb[0].mxu0
    %v1023 = vpop.f32.mrb[0].mxu0
    %v1024 = vadd.f32 %v927, %v1023
    %v1025 = vpop.f32.mrb[0].mxu0
    %1026 = vmatprep.mubr.bf16.mxu0 %v470
    %1027 = vmatmul.mubr.bf16.gmra.mrb[0].mxu0 %v469
    %v1028 = vpop.f32.mrb[0].mxu0
    %v1029 = vadd.f32 %v932, %v1028
    %v1030 = vpop.f32.mrb[0].mxu0
    %v1031 = vpop.f32.mrb[0].mxu0
    %v1032 = vadd.f32 %v935, %v1031
    %v1033 = vpop.f32.mrb[0].mxu0
    %1034 = vdwg.mxu0
    %1035 = vmatprep.subr.bf16.mxu0 0
    %1036 = vmatpush1.bf16.msra.mxu0 %v750
    %1037 = vmatprep.subr.bf16.mxu0 0
    %1038 = vmatpush1.bf16.msra.mxu0 %v751
    %1039 = vmatprep.subr.bf16.mxu0 0
    %1040 = vmatpush1.bf16.msra.mxu0 %v752
    %1041 = vmatprep.subr.bf16.mxu0 0
    %1042 = vmatpush1.bf16.msra.mxu0 %v753
    %1043 = vmatprep.subr.bf16.mxu0 0
    %1044 = vmatpush1.bf16.msra.mxu0 %v754
    %1045 = vmatprep.subr.bf16.mxu0 0
    %1046 = vmatpush1.bf16.msra.mxu0 %v755
    %1047 = vmatprep.subr.bf16.mxu0 0
    %1048 = vmatpush1.bf16.msra.mxu0 %v756
    %1049 = vmatprep.subr.bf16.mxu0 0
    %1050 = vmatpush1.bf16.msra.mxu0 %v757
    %1051 = vmatprep.subr.bf16.mxu0 0
    %1052 = vmatpush1.bf16.msra.mxu0 %v758
    %1053 = vmatprep.subr.bf16.mxu0 0
    %1054 = vmatpush1.bf16.msra.mxu0 %v759
    %1055 = vmatprep.subr.bf16.mxu0 0
    %1056 = vmatpush1.bf16.msra.mxu0 %v760
    %1057 = vmatprep.subr.bf16.mxu0 0
    %1058 = vmatpush1.bf16.msra.mxu0 %v761
    %1059 = vmatprep.subr.bf16.mxu0 0
    %1060 = vmatpush1.bf16.msra.mxu0 %v762
    %1061 = vmatprep.subr.bf16.mxu0 0
    %1062 = vmatpush1.bf16.msra.mxu0 %v763
    %1063 = vmatprep.subr.bf16.mxu0 0
    %1064 = vmatpush1.bf16.msra.mxu0 %v764
    %1065 = vmatprep.subr.bf16.mxu0 0
    %1066 = vmatpush1.bf16.msra.mxu0 %v765
    %1067 = vmatprep.mubr.bf16.mxu0 %v423
    %1068 = vmatmul.mubr.bf16.gmra.mrb[0].mxu0 %v422
    %v1069 = vpop.f32.mrb[0].mxu0
    %v1070 = vadd.f32 %v973, %v1069
    %v1071 = vpop.f32.mrb[0].mxu0
    %v1072 = vpop.f32.mrb[0].mxu0
    %v1073 = vadd.f32 %v976, %v1072
    %v1074 = vpop.f32.mrb[0].mxu0
    %1075 = vmatprep.mubr.bf16.mxu0 %v430
    %1076 = vmatmul.mubr.bf16.gmra.mrb[0].mxu0 %v429
    %v1077 = vpop.f32.mrb[0].mxu0
    %v1078 = vadd.f32 %v981, %v1077
    %v1079 = vpop.f32.mrb[0].mxu0
    %v1080 = vpop.f32.mrb[0].mxu0
    %v1081 = vadd.f32 %v984, %v1080
    %v1082 = vpop.f32.mrb[0].mxu0
    %1083 = vmatprep.mubr.bf16.mxu0 %v437
    %1084 = vmatmul.mubr.bf16.gmra.mrb[0].mxu0 %v436
    %v1085 = vpop.f32.mrb[0].mxu0
    %v1086 = vadd.f32 %v989, %v1085
    %v1087 = vpop.f32.mrb[0].mxu0
    %v1088 = vpop.f32.mrb[0].mxu0
    %v1089 = vadd.f32 %v992, %v1088
    %v1090 = vpop.f32.mrb[0].mxu0
    %1091 = vmatprep.mubr.bf16.mxu0 %v444
    %1092 = vmatmul.mubr.bf16.gmra.mrb[0].mxu0 %v443
    %v1093 = vpop.f32.mrb[0].mxu0
    %v1094 = vadd.f32 %v997, %v1093
    %v1095 = vpop.f32.mrb[0].mxu0
    %v1096 = vpop.f32.mrb[0].mxu0
    %v1097 = vadd.f32 %v1000, %v1096
    %v1098 = vpop.f32.mrb[0].mxu0
    %1099 = vmatprep.mubr.bf16.mxu0 %v451
    %1100 = vmatmul.mubr.bf16.gmra.mrb[0].mxu0 %v450
    %v1101 = vpop.f32.mrb[0].mxu0
    %v1102 = vadd.f32 %v1005, %v1101
    %v1103 = vpop.f32.mrb[0].mxu0
    %v1104 = vpop.f32.mrb[0].mxu0
    %v1105 = vadd.f32 %v1008, %v1104
    %v1106 = vpop.f32.mrb[0].mxu0
    %1107 = vmatprep.mubr.bf16.mxu0 %v458
    %1108 = vmatmul.mubr.bf16.gmra.mrb[0].mxu0 %v457
    %v1109 = vpop.f32.mrb[0].mxu0
    %v1110 = vadd.f32 %v1013, %v1109
    %v1111 = vpop.f32.mrb[0].mxu0
    %v1112 = vpop.f32.mrb[0].mxu0
    %v1113 = vadd.f32 %v1016, %v1112
    %v1114 = vpop.f32.mrb[0].mxu0
    %1115 = vmatprep.mubr.bf16.mxu0 %v465
    %1116 = vmatmul.mubr.bf16.gmra.mrb[0].mxu0 %v464
    %v1117 = vpop.f32.mrb[0].mxu0
    %v1118 = vadd.f32 %v1021, %v1117
    %v1119 = vpop.f32.mrb[0].mxu0
    %v1120 = vpop.f32.mrb[0].mxu0
    %v1121 = vadd.f32 %v1024, %v1120
    %v1122 = vpop.f32.mrb[0].mxu0
    %1123 = vmatprep.mubr.bf16.mxu0 %v472
    %1124 = vmatmul.mubr.bf16.gmra.mrb[0].mxu0 %v471
    %v1125 = vpop.f32.mrb[0].mxu0
    %v1126 = vadd.f32 %v1029, %v1125
    %v1127 = vpop.f32.mrb[0].mxu0
    %v1128 = vpop.f32.mrb[0].mxu0
    %v1129 = vadd.f32 %v1032, %v1128
    %v1130 = vpop.f32.mrb[0].mxu0
    %1131 = vdwg.mxu0
    %1132 = vmatprep.subr.bf16.mxu0 0
    %1133 = vmatpush1.bf16.msra.mxu0 %v766
    %1134 = vmatprep.subr.bf16.mxu0 0
    %1135 = vmatpush1.bf16.msra.mxu0 0
    %1136 = vmatprep.subr.bf16.mxu0 0
    %1137 = vmatpush1.bf16.msra.mxu0 0
    %1138 = vmatprep.subr.bf16.mxu0 0
    %1139 = vmatpush1.bf16.msra.mxu0 0
    %1140 = vmatprep.subr.bf16.mxu0 0
    %1141 = vmatpush1.bf16.msra.mxu0 0
    %1142 = vmatprep.subr.bf16.mxu0 0
    %1143 = vmatpush1.bf16.msra.mxu0 0
    %1144 = vmatprep.subr.bf16.mxu0 0
    %1145 = vmatpush1.bf16.msra.mxu0 0
    %1146 = vmatprep.subr.bf16.mxu0 0
    %1147 = vmatpush1.bf16.msra.mxu0 0
    %1148 = vmatprep.subr.bf16.mxu0 0
    %1149 = vmatpush1.bf16.msra.mxu0 0
    %1150 = vmatprep.subr.bf16.mxu0 0
    %1151 = vmatpush1.bf16.msra.mxu0 0
    %1152 = vmatprep.subr.bf16.mxu0 0
    %1153 = vmatpush1.bf16.msra.mxu0 0
    %1154 = vmatprep.subr.bf16.mxu0 0
    %1155 = vmatpush1.bf16.msra.mxu0 0
    %1156 = vmatprep.subr.bf16.mxu0 0
    %1157 = vmatpush1.bf16.msra.mxu0 0
    %1158 = vmatprep.subr.bf16.mxu0 0
    %1159 = vmatpush1.bf16.msra.mxu0 0
    %1160 = vmatprep.subr.bf16.mxu0 0
    %1161 = vmatpush1.bf16.msra.mxu0 0
    %1162 = vmatprep.subr.bf16.mxu0 0
    %1163 = vmatpush1.bf16.msra.mxu0 0
    %1164 = vmatprep.mubr.bf16.mxu0 0
    %1165 = vmatmul.mubr.bf16.gmra.mrb[0].mxu0 %v818
    %v1166 = vpop.f32.mrb[0].mxu0
    %v1167 = vadd.f32 %v1070, %v1166
    %v1168 = vpop.f32.mrb[0].mxu0
    %v1169 = vpop.f32.mrb[0].mxu0
    %v1170 = vadd.f32 %v1073, %v1169
    %v1171 = vpop.f32.mrb[0].mxu0
    %1172 = vmatprep.mubr.bf16.mxu0 0
    %1173 = vmatmul.mubr.bf16.gmra.mrb[0].mxu0 %v821
    %v1174 = vpop.f32.mrb[0].mxu0
    %v1175 = vadd.f32 %v1078, %v1174
    %v1176 = vpop.f32.mrb[0].mxu0
    %v1177 = vpop.f32.mrb[0].mxu0
    %v1178 = vadd.f32 %v1081, %v1177
    %v1179 = vpop.f32.mrb[0].mxu0
    %1180 = vmatprep.mubr.bf16.mxu0 0
    %1181 = vmatmul.mubr.bf16.gmra.mrb[0].mxu0 %v824
    %v1182 = vpop.f32.mrb[0].mxu0
    %v1183 = vadd.f32 %v1086, %v1182
    %v1184 = vpop.f32.mrb[0].mxu0
    %v1185 = vpop.f32.mrb[0].mxu0
    %v1186 = vadd.f32 %v1089, %v1185
    %v1187 = vpop.f32.mrb[0].mxu0
    %1188 = vmatprep.mubr.bf16.mxu0 0
    %1189 = vmatmul.mubr.bf16.gmra.mrb[0].mxu0 %v827
    %v1190 = vpop.f32.mrb[0].mxu0
    %v1191 = vadd.f32 %v1094, %v1190
    %v1192 = vpop.f32.mrb[0].mxu0
    %v1193 = vpop.f32.mrb[0].mxu0
    %v1194 = vadd.f32 %v1097, %v1193
    %v1195 = vpop.f32.mrb[0].mxu0
    %1196 = vmatprep.mubr.bf16.mxu0 0
    %1197 = vmatmul.mubr.bf16.gmra.mrb[0].mxu0 %v830
    %v1198 = vpop.f32.mrb[0].mxu0
    %v1199 = vadd.f32 %v1102, %v1198
    %v1200 = vpop.f32.mrb[0].mxu0
    %v1201 = vpop.f32.mrb[0].mxu0
    %v1202 = vadd.f32 %v1105, %v1201
    %v1203 = vpop.f32.mrb[0].mxu0
    %1204 = vmatprep.mubr.bf16.mxu0 0
    %1205 = vmatmul.mubr.bf16.gmra.mrb[0].mxu0 %v833
    %v1206 = vpop.f32.mrb[0].mxu0
    %v1207 = vadd.f32 %v1110, %v1206
    %v1208 = vpop.f32.mrb[0].mxu0
    %v1209 = vpop.f32.mrb[0].mxu0
    %v1210 = vadd.f32 %v1113, %v1209
    %v1211 = vpop.f32.mrb[0].mxu0
    %1212 = vmatprep.mubr.bf16.mxu0 0
    %1213 = vmatmul.mubr.bf16.gmra.mrb[0].mxu0 %v836
    %v1214 = vpop.f32.mrb[0].mxu0
    %v1215 = vadd.f32 %v1118, %v1214
    %v1216 = vpop.f32.mrb[0].mxu0
    %v1217 = vpop.f32.mrb[0].mxu0
    %v1218 = vadd.f32 %v1121, %v1217
    %v1219 = vpop.f32.mrb[0].mxu0
    %1220 = vmatprep.mubr.bf16.mxu0 0
    %1221 = vmatmul.mubr.bf16.gmra.mrb[0].mxu0 %v839
    %v1222 = vpop.f32.mrb[0].mxu0
    %v1223 = vadd.f32 %v1126, %v1222
    %v1224 = vpop.f32.mrb[0].mxu0
    %v1225 = vpop.f32.mrb[0].mxu0
    %v1226 = vadd.f32 %v1129, %v1225
    %v1227 = vpop.f32.mrb[0].mxu0
    %1228 = vdwg.mxu0
    %v1229 = vmax.f32 %v1167, 0.0
    %v1230 = vmax.f32 %v1170, 0.0
    %v1231 = vmax.f32 %v1175, 0.0
    %v1232 = vmax.f32 %v1178, 0.0
    %v1233 = vmax.f32 %v1183, 0.0
    %v1234 = vmax.f32 %v1186, 0.0
    %v1235 = vmax.f32 %v1191, 0.0
    %v1236 = vmax.f32 %v1194, 0.0
    %v1237 = vmax.f32 %v1199, 0.0
    %v1238 = vmax.f32 %v1202, 0.0
    %v1239 = vmax.f32 %v1207, 0.0
    %v1240 = vmax.f32 %v1210, 0.0
    %v1241 = vmax.f32 %v1215, 0.0
    %v1242 = vmax.f32 %v1218, 0.0
    %v1243 = vmax.f32 %v1223, 0.0
    %v1244 = vmax.f32 %v1226, 0.0
    %s1245 = smul.u32 0, 128
    %v1246 = vlaneseq
    %v1247 = vshrl.u32 %v1246, 7
    %v1248 = vadd.s32 %v1247, 8
    %v1249 = vadd.s32 %v1247, 16
    %v1250 = vadd.s32 %v1247, 24
    %v1251 = vadd.s32 %v1247, 32
    %v1252 = vadd.s32 %v1247, 40
    %v1253 = vadd.s32 %v1247, 48
    %v1254 = vadd.s32 %v1247, 56
    %v1255 = vadd.s32 %v1247, 64
    %v1256 = vadd.s32 %v1247, 72
    %v1257 = vadd.s32 %v1247, 80
    %v1258 = vadd.s32 %v1247, 88
    %v1259 = vadd.s32 %v1247, 96
    %v1260 = vadd.s32 %v1247, 104
    %v1261 = vadd.s32 %v1247, 112
    %v1262 = vadd.s32 %v1247, 120
    %v1263 = vstv %s1245
    %v1264 = vadd.s32 %v1263, %v1247
    %v1265 = vadd.s32 %v1263, %v1248
    %v1266 = vadd.s32 %v1263, %v1249
    %v1267 = vadd.s32 %v1263, %v1250
    %v1268 = vadd.s32 %v1263, %v1251
    %v1269 = vadd.s32 %v1263, %v1252
    %v1270 = vadd.s32 %v1263, %v1253
    %v1271 = vadd.s32 %v1263, %v1254
    %v1272 = vadd.s32 %v1263, %v1255
    %v1273 = vadd.s32 %v1263, %v1256
    %v1274 = vadd.s32 %v1263, %v1257
    %v1275 = vadd.s32 %v1263, %v1258
    %v1276 = vadd.s32 %v1263, %v1259
    %v1277 = vadd.s32 %v1263, %v1260
    %v1278 = vadd.s32 %v1263, %v1261
    %v1279 = vadd.s32 %v1263, %v1262
    %vm1280 = vcmp.lt.s32.totalorder %v1264, 8
    %vm1281 = vcmp.lt.s32.totalorder %v1265, 8
    %vm1282 = vcmp.lt.s32.totalorder %v1266, 8
    %vm1283 = vcmp.lt.s32.totalorder %v1267, 8
    %vm1284 = vcmp.lt.s32.totalorder %v1268, 8
    %vm1285 = vcmp.lt.s32.totalorder %v1269, 8
    %vm1286 = vcmp.lt.s32.totalorder %v1270, 8
    %vm1287 = vcmp.lt.s32.totalorder %v1271, 8
    %vm1288 = vcmp.lt.s32.totalorder %v1272, 8
    %vm1289 = vcmp.lt.s32.totalorder %v1273, 8
    %vm1290 = vcmp.lt.s32.totalorder %v1274, 8
    %vm1291 = vcmp.lt.s32.totalorder %v1275, 8
    %vm1292 = vcmp.lt.s32.totalorder %v1276, 8
    %vm1293 = vcmp.lt.s32.totalorder %v1277, 8
    %vm1294 = vcmp.lt.s32.totalorder %v1278, 8
    %vm1295 = vcmp.lt.s32.totalorder %v1279, 8
    %v1296 = vsel %vm1280, 1, 0
    %v1297 = vsel %vm1281, 1, 0
    %v1298 = vsel %vm1282, 1, 0
    %v1299 = vsel %vm1283, 1, 0
    %v1300 = vsel %vm1284, 1, 0
    %v1301 = vsel %vm1285, 1, 0
    %v1302 = vsel %vm1286, 1, 0
    %v1303 = vsel %vm1287, 1, 0
    %v1304 = vsel %vm1288, 1, 0
    %v1305 = vsel %vm1289, 1, 0
    %v1306 = vsel %vm1290, 1, 0
    %v1307 = vsel %vm1291, 1, 0
    %v1308 = vsel %vm1292, 1, 0
    %v1309 = vsel %vm1293, 1, 0
    %v1310 = vsel %vm1294, 1, 0
    %v1311 = vsel %vm1295, 1, 0
    %vm1312 = vcmp.eq.s32.totalorder %v1296, 1
    %vm1313 = vcmp.eq.s32.totalorder %v1297, 1
    %vm1314 = vcmp.eq.s32.totalorder %v1298, 1
    %vm1315 = vcmp.eq.s32.totalorder %v1299, 1
    %vm1316 = vcmp.eq.s32.totalorder %v1300, 1
    %vm1317 = vcmp.eq.s32.totalorder %v1301, 1
    %vm1318 = vcmp.eq.s32.totalorder %v1302, 1
    %vm1319 = vcmp.eq.s32.totalorder %v1303, 1
    %vm1320 = vcmp.eq.s32.totalorder %v1304, 1
    %vm1321 = vcmp.eq.s32.totalorder %v1305, 1
    %vm1322 = vcmp.eq.s32.totalorder %v1306, 1
    %vm1323 = vcmp.eq.s32.totalorder %v1307, 1
    %vm1324 = vcmp.eq.s32.totalorder %v1308, 1
    %vm1325 = vcmp.eq.s32.totalorder %v1309, 1
    %vm1326 = vcmp.eq.s32.totalorder %v1310, 1
    %vm1327 = vcmp.eq.s32.totalorder %v1311, 1
    %v1328 = vsel %vm1312, %v1229, 0.0
    %v1329 = vsel %vm1313, %v1230, 0.0
    %v1330 = vsel %vm1314, %v1231, 0.0
    %v1331 = vsel %vm1315, %v1232, 0.0
    %v1332 = vsel %vm1316, %v1233, 0.0
    %v1333 = vsel %vm1317, %v1234, 0.0
    %v1334 = vsel %vm1318, %v1235, 0.0
    %v1335 = vsel %vm1319, %v1236, 0.0
    %v1336 = vsel %vm1320, %v1237, 0.0
    %v1337 = vsel %vm1321, %v1238, 0.0
    %v1338 = vsel %vm1322, %v1239, 0.0
    %v1339 = vsel %vm1323, %v1240, 0.0
    %v1340 = vsel %vm1324, %v1241, 0.0
    %v1341 = vsel %vm1325, %v1242, 0.0
    %v1342 = vsel %vm1326, %v1243, 0.0
    %v1343 = vsel %vm1327, %v1244, 0.0
    %v1344 = vld [vmem:[%s3] sm:$0xff]
    %v1345 = vld [vmem:[%s3 + $0x8] sm:$0xff]
    %v1346 = vld [vmem:[%s3 + $0x10] sm:$0xff]
    %v1347 = vld [vmem:[%s3 + $0x18] sm:$0xff]
    %v1348 = vld [vmem:[%s3 + $0x20] sm:$0xff]
    %v1349 = vld [vmem:[%s3 + $0x28] sm:$0xff]
    %v1350 = vld [vmem:[%s3 + $0x30] sm:$0xff]
    %v1351 = vld [vmem:[%s3 + $0x38] sm:$0xff]
    %v1352 = vld [vmem:[%s3 + $0x40] sm:$0xff]
    %v1353 = vld [vmem:[%s3 + $0x48] sm:$0xff]
    %v1354 = vld [vmem:[%s3 + $0x50] sm:$0xff]
    %v1355 = vld [vmem:[%s3 + $0x58] sm:$0xff]
    %v1356 = vld [vmem:[%s3 + $0x60] sm:$0xff]
    %v1357 = vld [vmem:[%s3 + $0x68] sm:$0xff]
    %v1358 = vld [vmem:[%s3 + $0x70] sm:$0xff]
    %v1359 = vld [vmem:[%s3 + $0x78] sm:$0xff]
    %v1360 = vld [vmem:[%s4] sm:$0x1]
    %v1362 = vlaneseq
    %v1363 = vshrl.u32 %v1362, 7
    %v1364 = vsub.s32 0, %v1363
    %v1365 = vrot.slane %v1360, %v1364
    %1367 = vmatprep.subr.mxu0 0.0
    %1368 = vmatpush1.msra.mxu0 %v1344
    %1369 = vmatprep.subr.mxu0 0.0
    %1370 = vmatpush1.msra.mxu0 %v1345
    %1371 = vmatprep.subr.mxu0 0.0
    %1372 = vmatpush1.msra.mxu0 %v1346
    %1373 = vmatprep.subr.mxu0 0.0
    %1374 = vmatpush1.msra.mxu0 %v1347
    %1375 = vmatprep.subr.mxu0 0.0
    %1376 = vmatpush1.msra.mxu0 %v1348
    %1377 = vmatprep.subr.mxu0 0.0
    %1378 = vmatpush1.msra.mxu0 %v1349
    %1379 = vmatprep.subr.mxu0 0.0
    %1380 = vmatpush1.msra.mxu0 %v1350
    %1381 = vmatprep.subr.mxu0 0.0
    %1382 = vmatpush1.msra.mxu0 %v1351
    %1383 = vmatprep.subr.mxu0 0.0
    %1384 = vmatpush1.msra.mxu0 %v1352
    %1385 = vmatprep.subr.mxu0 0.0
    %1386 = vmatpush1.msra.mxu0 %v1353
    %1387 = vmatprep.subr.mxu0 0.0
    %1388 = vmatpush1.msra.mxu0 %v1354
    %1389 = vmatprep.subr.mxu0 0.0
    %1390 = vmatpush1.msra.mxu0 %v1355
    %1391 = vmatprep.subr.mxu0 0.0
    %1392 = vmatpush1.msra.mxu0 %v1356
    %1393 = vmatprep.subr.mxu0 0.0
    %1394 = vmatpush1.msra.mxu0 %v1357
    %1395 = vmatprep.subr.mxu0 0.0
    %1396 = vmatpush1.msra.mxu0 %v1358
    %1397 = vmatprep.subr.mxu0 0.0
    %1398 = vmatpush1.msra.mxu0 %v1359
    %1399 = vmatprep.subr.mxu0 0.0
    %1400 = vmatpush1.msra.mxu0 0.0
    %1401 = vmatprep.subr.mxu0 0.0
    %1402 = vmatpush1.msra.mxu0 0.0
    %1403 = vmatprep.subr.mxu0 0.0
    %1404 = vmatpush1.msra.mxu0 0.0
    %1405 = vmatprep.subr.mxu0 0.0
    %1406 = vmatpush1.msra.mxu0 0.0
    %1407 = vmatprep.subr.mxu0 0.0
    %1408 = vmatpush1.msra.mxu0 0.0
    %1409 = vmatprep.subr.mxu0 0.0
    %1410 = vmatpush1.msra.mxu0 0.0
    %1411 = vmatprep.subr.mxu0 0.0
    %1412 = vmatpush1.msra.mxu0 0.0
    %1413 = vmatprep.subr.mxu0 0.0
    %1414 = vmatpush1.msra.mxu0 0.0
    %1415 = vmatprep.subr.mxu0 0.0
    %1416 = vmatpush1.msra.mxu0 0.0
    %1417 = vmatprep.subr.mxu0 0.0
    %1418 = vmatpush1.msra.mxu0 0.0
    %1419 = vmatprep.subr.mxu0 0.0
    %1420 = vmatpush1.msra.mxu0 0.0
    %1421 = vmatprep.subr.mxu0 0.0
    %1422 = vmatpush1.msra.mxu0 0.0
    %1423 = vmatprep.subr.mxu0 0.0
    %1424 = vmatpush1.msra.mxu0 0.0
    %1425 = vmatprep.subr.mxu0 0.0
    %1426 = vmatpush1.msra.mxu0 0.0
    %1427 = vmatprep.subr.mxu0 0.0
    %1428 = vmatpush1.msra.mxu0 0.0
    %1429 = vmatprep.subr.mxu0 0.0
    %1430 = vmatpush1.msra.mxu0 0.0
    %1431 = vmatprep.mubr.f32.mxu0 0.0
    %1432 = vmatmul.mubr.f32.gmra.mrb[0].mxu0 %v1328
    %v1433 = vpop.f32.mrb[0].mxu0
    %v1434 = vadd.f32 %v1365, %v1433
    %v1435 = vpop.f32.mrb[0].mxu0
    %1436 = vmatprep.mubr.f32.mxu0 0.0
    %1437 = vmatmul.mubr.f32.gmra.mrb[0].mxu0 %v1329
    %v1438 = vpop.f32.mrb[0].mxu0
    %v1439 = vadd.f32 %v1365, %v1438
    %v1440 = vpop.f32.mrb[0].mxu0
    %1441 = vmatprep.mubr.f32.mxu0 0.0
    %1442 = vmatmul.mubr.f32.gmra.mrb[0].mxu0 %v1330
    %v1443 = vpop.f32.mrb[0].mxu0
    %v1444 = vadd.f32 %v1365, %v1443
    %v1445 = vpop.f32.mrb[0].mxu0
    %1446 = vmatprep.mubr.f32.mxu0 0.0
    %1447 = vmatmul.mubr.f32.gmra.mrb[0].mxu0 %v1331
    %v1448 = vpop.f32.mrb[0].mxu0
    %v1449 = vadd.f32 %v1365, %v1448
    %v1450 = vpop.f32.mrb[0].mxu0
    %1451 = vmatprep.mubr.f32.mxu0 0.0
    %1452 = vmatmul.mubr.f32.gmra.mrb[0].mxu0 %v1332
    %v1453 = vpop.f32.mrb[0].mxu0
    %v1454 = vadd.f32 %v1365, %v1453
    %v1455 = vpop.f32.mrb[0].mxu0
    %1456 = vmatprep.mubr.f32.mxu0 0.0
    %1457 = vmatmul.mubr.f32.gmra.mrb[0].mxu0 %v1333
    %v1458 = vpop.f32.mrb[0].mxu0
    %v1459 = vadd.f32 %v1365, %v1458
    %v1460 = vpop.f32.mrb[0].mxu0
    %1461 = vmatprep.mubr.f32.mxu0 0.0
    %1462 = vmatmul.mubr.f32.gmra.mrb[0].mxu0 %v1334
    %v1463 = vpop.f32.mrb[0].mxu0
    %v1464 = vadd.f32 %v1365, %v1463
    %v1465 = vpop.f32.mrb[0].mxu0
    %1466 = vmatprep.mubr.f32.mxu0 0.0
    %1467 = vmatmul.mubr.f32.gmra.mrb[0].mxu0 %v1335
    %v1468 = vpop.f32.mrb[0].mxu0
    %v1469 = vadd.f32 %v1365, %v1468
    %v1470 = vpop.f32.mrb[0].mxu0
    %1471 = vmatprep.mubr.f32.mxu0 0.0
    %1472 = vmatmul.mubr.f32.gmra.mrb[0].mxu0 %v1336
    %v1473 = vpop.f32.mrb[0].mxu0
    %v1474 = vadd.f32 %v1365, %v1473
    %v1475 = vpop.f32.mrb[0].mxu0
    %1476 = vmatprep.mubr.f32.mxu0 0.0
    %1477 = vmatmul.mubr.f32.gmra.mrb[0].mxu0 %v1337
    %v1478 = vpop.f32.mrb[0].mxu0
    %v1479 = vadd.f32 %v1365, %v1478
    %v1480 = vpop.f32.mrb[0].mxu0
    %1481 = vmatprep.mubr.f32.mxu0 0.0
    %1482 = vmatmul.mubr.f32.gmra.mrb[0].mxu0 %v1338
    %v1483 = vpop.f32.mrb[0].mxu0
    %v1484 = vadd.f32 %v1365, %v1483
    %v1485 = vpop.f32.mrb[0].mxu0
    %1486 = vmatprep.mubr.f32.mxu0 0.0
    %1487 = vmatmul.mubr.f32.gmra.mrb[0].mxu0 %v1339
    %v1488 = vpop.f32.mrb[0].mxu0
    %v1489 = vadd.f32 %v1365, %v1488
    %v1490 = vpop.f32.mrb[0].mxu0
    %1491 = vmatprep.mubr.f32.mxu0 0.0
    %1492 = vmatmul.mubr.f32.gmra.mrb[0].mxu0 %v1340
    %v1493 = vpop.f32.mrb[0].mxu0
    %v1494 = vadd.f32 %v1365, %v1493
    %v1495 = vpop.f32.mrb[0].mxu0
    %1496 = vmatprep.mubr.f32.mxu0 0.0
    %1497 = vmatmul.mubr.f32.gmra.mrb[0].mxu0 %v1341
    %v1498 = vpop.f32.mrb[0].mxu0
    %v1499 = vadd.f32 %v1365, %v1498
    %v1500 = vpop.f32.mrb[0].mxu0
    %1501 = vmatprep.mubr.f32.mxu0 0.0
    %1502 = vmatmul.mubr.f32.gmra.mrb[0].mxu0 %v1342
    %v1503 = vpop.f32.mrb[0].mxu0
    %v1504 = vadd.f32 %v1365, %v1503
    %v1505 = vpop.f32.mrb[0].mxu0
    %1506 = vmatprep.mubr.f32.mxu0 0.0
    %1507 = vmatmul.mubr.f32.gmra.mrb[0].mxu0 %v1343
    %v1508 = vpop.f32.mrb[0].mxu0
    %v1509 = vadd.f32 %v1365, %v1508
    %v1510 = vpop.f32.mrb[0].mxu0
    %1511 = vdwg.mxu0
    %v1512 = vmax.f32 %v1434, 0.0
    %v1513 = vmax.f32 %v1439, 0.0
    %v1514 = vmax.f32 %v1444, 0.0
    %v1515 = vmax.f32 %v1449, 0.0
    %v1516 = vmax.f32 %v1454, 0.0
    %v1517 = vmax.f32 %v1459, 0.0
    %v1518 = vmax.f32 %v1464, 0.0
    %v1519 = vmax.f32 %v1469, 0.0
    %v1520 = vmax.f32 %v1474, 0.0
    %v1521 = vmax.f32 %v1479, 0.0
    %v1522 = vmax.f32 %v1484, 0.0
    %v1523 = vmax.f32 %v1489, 0.0
    %v1524 = vmax.f32 %v1494, 0.0
    %v1525 = vmax.f32 %v1499, 0.0
    %v1526 = vmax.f32 %v1504, 0.0
    %v1527 = vmax.f32 %v1509, 0.0
    %v1528 = vld [vmem:[%s5] sm:$0x1]
    %v1529 = vld [vmem:[#allocation5] sm:$0x1]
    %1531 = vset.pattern.permute.xlu0 0
    %1532 = vperm.xlu0 %1531, %v1529
    %v1533 = vpop.permute.xlu0 %1532
    %v1535 = vlaneseq
    %v1536 = vshrl.u32 %v1535, 7
    %v1537 = vsub.s32 0, %v1536
    %v1538 = vrot.slane %v1533, %v1537
    %vm1539 = vcmask 64512
    %v1541 = vsel %vm1539, %v1528, 0
    %v1544 = vsel %vm1539, %v1512, 0
    %v1547 = vsel %vm1539, %v1513, 0
    %v1550 = vsel %vm1539, %v1514, 0
    %v1553 = vsel %vm1539, %v1515, 0
    %v1556 = vsel %vm1539, %v1516, 0
    %v1559 = vsel %vm1539, %v1517, 0
    %v1562 = vsel %vm1539, %v1518, 0
    %v1565 = vsel %vm1539, %v1519, 0
    %v1568 = vsel %vm1539, %v1520, 0
    %v1571 = vsel %vm1539, %v1521, 0
    %v1574 = vsel %vm1539, %v1522, 0
    %v1577 = vsel %vm1539, %v1523, 0
    %v1580 = vsel %vm1539, %v1524, 0
    %v1583 = vsel %vm1539, %v1525, 0
    %v1586 = vsel %vm1539, %v1526, 0
    %v1589 = vsel %vm1539, %v1527, 0
    %1591 = vmatprep.subr.mxu0 0.0
    %1592 = vmatpush1.xpose.msra.mxu0 %v1544
    %1593 = vmatprep.subr.mxu0 0.0
    %1594 = vmatpush1.xpose.msra.mxu0 %v1547
    %1595 = vmatprep.subr.mxu0 0.0
    %1596 = vmatpush1.xpose.msra.mxu0 %v1550
    %1597 = vmatprep.subr.mxu0 0.0
    %1598 = vmatpush1.xpose.msra.mxu0 %v1553
    %1599 = vmatprep.subr.mxu0 0.0
    %1600 = vmatpush1.xpose.msra.mxu0 %v1556
    %1601 = vmatprep.subr.mxu0 0.0
    %1602 = vmatpush1.xpose.msra.mxu0 %v1559
    %1603 = vmatprep.subr.mxu0 0.0
    %1604 = vmatpush1.xpose.msra.mxu0 %v1562
    %1605 = vmatprep.subr.mxu0 0.0
    %1606 = vmatpush1.xpose.msra.mxu0 %v1565
    %1607 = vmatprep.subr.mxu0 0.0
    %1608 = vmatpush1.xpose.msra.mxu0 %v1568
    %1609 = vmatprep.subr.mxu0 0.0
    %1610 = vmatpush1.xpose.msra.mxu0 %v1571
    %1611 = vmatprep.subr.mxu0 0.0
    %1612 = vmatpush1.xpose.msra.mxu0 %v1574
    %1613 = vmatprep.subr.mxu0 0.0
    %1614 = vmatpush1.xpose.msra.mxu0 %v1577
    %1615 = vmatprep.subr.mxu0 0.0
    %1616 = vmatpush1.xpose.msra.mxu0 %v1580
    %1617 = vmatprep.subr.mxu0 0.0
    %1618 = vmatpush1.xpose.msra.mxu0 %v1583
    %1619 = vmatprep.subr.mxu0 0.0
    %1620 = vmatpush1.xpose.msra.mxu0 %v1586
    %1621 = vmatprep.subr.mxu0 0.0
    %1622 = vmatpush1.xpose.msra.mxu0 %v1589
    %1623 = vmatprep.subr.mxu0 0.0
    %1624 = vmatpush1.xpose.msra.mxu0 0.0
    %1625 = vmatprep.subr.mxu0 0.0
    %1626 = vmatpush1.xpose.msra.mxu0 0.0
    %1627 = vmatprep.subr.mxu0 0.0
    %1628 = vmatpush1.xpose.msra.mxu0 0.0
    %1629 = vmatprep.subr.mxu0 0.0
    %1630 = vmatpush1.xpose.msra.mxu0 0.0
    %1631 = vmatprep.subr.mxu0 0.0
    %1632 = vmatpush1.xpose.msra.mxu0 0.0
    %1633 = vmatprep.subr.mxu0 0.0
    %1634 = vmatpush1.xpose.msra.mxu0 0.0
    %1635 = vmatprep.subr.mxu0 0.0
    %1636 = vmatpush1.xpose.msra.mxu0 0.0
    %1637 = vmatprep.subr.mxu0 0.0
    %1638 = vmatpush1.xpose.msra.mxu0 0.0
    %1639 = vmatprep.subr.mxu0 0.0
    %1640 = vmatpush1.xpose.msra.mxu0 0.0
    %1641 = vmatprep.subr.mxu0 0.0
    %1642 = vmatpush1.xpose.msra.mxu0 0.0
    %1643 = vmatprep.subr.mxu0 0.0
    %1644 = vmatpush1.xpose.msra.mxu0 0.0
    %1645 = vmatprep.subr.mxu0 0.0
    %1646 = vmatpush1.xpose.msra.mxu0 0.0
    %1647 = vmatprep.subr.mxu0 0.0
    %1648 = vmatpush1.xpose.msra.mxu0 0.0
    %1649 = vmatprep.subr.mxu0 0.0
    %1650 = vmatpush1.xpose.msra.mxu0 0.0
    %1651 = vmatprep.subr.mxu0 0.0
    %1652 = vmatpush1.xpose.msra.mxu0 0.0
    %1653 = vmatprep.subr.mxu0 0.0
    %1654 = vmatpush1.xpose.msra.mxu0 0.0
    %1655 = vmatprep.mubr.f32.mxu0 0.0
    %1656 = vmatmul.mubr.f32.gmra.mrb[0].mxu0 %v1541
    %v1657 = vpop.f32.mrb[0].mxu0
    %v1658 = vadd.f32 %v1538, %v1657
    %v1659 = vpop.f32.mrb[0].mxu0
    %1660 = vdwg.mxu0
    %v1661 = vlaneseq
    %v1662 = vand.u32 %v1661, 127
    %v1663 = vadd.s32 %v1263, %v1662
    %vm1664 = vcmp.lt.s32.totalorder %v1663, 8
    %v1665 = vsel %vm1664, %v1658, -inf
    %v1666 = vld [vmem:[#allocation2] sm:$0x1]
    %vm1667 = vcmask 1040384
    %v1668 = vsel %vm1667, %v1665, -inf
    %1669 = vmax.xlane.f32.xlu0 %v1668
    %v1670 = vpop.xlane.xlu0 %1669
    %v1671 = vmax.f32 %v1666, %v1670
    %v1672 = vsub.f32 %v1666, %v1671
    %v1673 = vmul.f32 %v1672, 1.442695
    %v1674 = vpow.pop %v1673
    %1676 = vset.pattern.permute.xlu0 0
    %1677 = vperm.xlu0 %1676, %v1671
    %v1678 = vpop.permute.xlu0 %1677
    %v1680 = vlaneseq
    %v1681 = vshrl.u32 %v1680, 7
    %v1682 = vsub.s32 0, %v1681
    %v1683 = vrot.slane %v1678, %v1682
    %v1684 = vsub.f32 %v1665, %v1683
    %v1685 = vmul.f32 %v1684, 1.442695
    %v1686 = vpow.pop %v1685
    %v1687 = vld [vmem:[#allocation3] sm:$0x1]
    %v1688 = vmul.f32 %v1687, %v1674
    %v1689 = vsel %vm1667, %v1686, 0.0
    %1690 = vadd.xlane.f32.xlu0 %v1689
    %v1691 = vpop.xlane.xlu0 %1690
    %v1692 = vadd.f32 %v1688, %v1691
    %vm1693 = vcmask 0
    %1694 = vst.msk [vmem:[#allocation3] sm:$0x1] %vm1693, %v1692
    %v1695 = vld [vmem:[#allocation4] sm:$0x1]
    %1697 = vset.pattern.permute.xlu0 0
    %1698 = vperm.xlu0 %1697, %v1674
    %v1699 = vpop.permute.xlu0 %1698
    %v1701 = vlaneseq
    %v1702 = vshrl.u32 %v1701, 7
    %v1703 = vsub.s32 0, %v1702
    %v1704 = vrot.slane %v1699, %v1703
    %v1705 = vmul.f32 %v1695, %v1704
    %1706 = vmatprep.subr.mxu0 0.0
    %1707 = vmatpush1.msra.mxu0 %v1328
    %1708 = vmatprep.subr.mxu0 0.0
    %1709 = vmatpush1.msra.mxu0 %v1329
    %1710 = vmatprep.subr.mxu0 0.0
    %1711 = vmatpush1.msra.mxu0 %v1330
    %1712 = vmatprep.subr.mxu0 0.0
    %1713 = vmatpush1.msra.mxu0 %v1331
    %1714 = vmatprep.subr.mxu0 0.0
    %1715 = vmatpush1.msra.mxu0 %v1332
    %1716 = vmatprep.subr.mxu0 0.0
    %1717 = vmatpush1.msra.mxu0 %v1333
    %1718 = vmatprep.subr.mxu0 0.0
    %1719 = vmatpush1.msra.mxu0 %v1334
    %1720 = vmatprep.subr.mxu0 0.0
    %1721 = vmatpush1.msra.mxu0 %v1335
    %1722 = vmatprep.subr.mxu0 0.0
    %1723 = vmatpush1.msra.mxu0 %v1336
    %1724 = vmatprep.subr.mxu0 0.0
    %1725 = vmatpush1.msra.mxu0 %v1337
    %1726 = vmatprep.subr.mxu0 0.0
    %1727 = vmatpush1.msra.mxu0 %v1338
    %1728 = vmatprep.subr.mxu0 0.0
    %1729 = vmatpush1.msra.mxu0 %v1339
    %1730 = vmatprep.subr.mxu0 0.0
    %1731 = vmatpush1.msra.mxu0 %v1340
    %1732 = vmatprep.subr.mxu0 0.0
    %1733 = vmatpush1.msra.mxu0 %v1341
    %1734 = vmatprep.subr.mxu0 0.0
    %1735 = vmatpush1.msra.mxu0 %v1342
    %1736 = vmatprep.subr.mxu0 0.0
    %1737 = vmatpush1.msra.mxu0 %v1343
    %1738 = vmatprep.subr.mxu0 0.0
    %1739 = vmatpush1.msra.mxu0 0.0
    %1740 = vmatprep.subr.mxu0 0.0
    %1741 = vmatpush1.msra.mxu0 0.0
    %1742 = vmatprep.subr.mxu0 0.0
    %1743 = vmatpush1.msra.mxu0 0.0
    %1744 = vmatprep.subr.mxu0 0.0
    %1745 = vmatpush1.msra.mxu0 0.0
    %1746 = vmatprep.subr.mxu0 0.0
    %1747 = vmatpush1.msra.mxu0 0.0
    %1748 = vmatprep.subr.mxu0 0.0
    %1749 = vmatpush1.msra.mxu0 0.0
    %1750 = vmatprep.subr.mxu0 0.0
    %1751 = vmatpush1.msra.mxu0 0.0
    %1752 = vmatprep.subr.mxu0 0.0
    %1753 = vmatpush1.msra.mxu0 0.0
    %1754 = vmatprep.subr.mxu0 0.0
    %1755 = vmatpush1.msra.mxu0 0.0
    %1756 = vmatprep.subr.mxu0 0.0
    %1757 = vmatpush1.msra.mxu0 0.0
    %1758 = vmatprep.subr.mxu0 0.0
    %1759 = vmatpush1.msra.mxu0 0.0
    %1760 = vmatprep.subr.mxu0 0.0
    %1761 = vmatpush1.msra.mxu0 0.0
    %1762 = vmatprep.subr.mxu0 0.0
    %1763 = vmatpush1.msra.mxu0 0.0
    %1764 = vmatprep.subr.mxu0 0.0
    %1765 = vmatpush1.msra.mxu0 0.0
    %1766 = vmatprep.subr.mxu0 0.0
    %1767 = vmatpush1.msra.mxu0 0.0
    %1768 = vmatprep.subr.mxu0 0.0
    %1769 = vmatpush1.msra.mxu0 0.0
    %1770 = vmatprep.mubr.f32.mxu0 0.0
    %1771 = vmatmul.mubr.f32.gmra.mrb[0].mxu0 %v1686
    %v1772 = vpop.f32.mrb[0].mxu0
    %v1773 = vadd.f32 0.0, %v1772
    %v1774 = vpop.f32.mrb[0].mxu0
    %1775 = vdwg.mxu0
    %v1776 = vadd.f32 %v1705, %v1773
    %1777 = vst [vmem:[#allocation4] sm:$0x1] %v1776
    %1778 = vst.msk [vmem:[#allocation2] sm:$0x1] %vm1693, %v1671
    %s1779 = sshra.s32 %s1245, 7
    %s1780 = sand.u32 %s1245, 127
    %s1781 = scalar_lea.vmem [#allocation10], %s1779
    %1782 = vst [vmem:[%s1781] sm:$0x1] %v1665
    // Predicated region
    $region62: #{tpu_custom_call.1} parent=1 // pred_check
      %p1783 = pneg %p65
    $region63: #{tpu_custom_call.1} parent=1 // pred_check_branch
      %1785 = sbr.rel (%p1783) target = $region65
    $region64: #{tpu_custom_call.1} parent=1 // pred_region
      %v1786 = vld [vmem:[#allocation3] sm:$0x1]
      %v1787 = vrcp.pop %v1786
      %v1788 = vmul.f32 1.0, %v1787
      %v1789 = vld [vmem:[#allocation4] sm:$0x1]
      %1791 = vset.pattern.permute.xlu0 0
      %1792 = vperm.xlu0 %1791, %v1788
      %v1793 = vpop.permute.xlu0 %1792
      %v1795 = vlaneseq
      %v1796 = vshrl.u32 %v1795, 7
      %v1797 = vsub.s32 0, %v1796
      %v1798 = vrot.slane %v1793, %v1797
      %v1799 = vmul.f32 %v1789, %v1798
      %v1800 = vld [vmem:[%s7] sm:$0xff]
      %v1801 = vld [vmem:[%s7 + $0x8] sm:$0xff]
      %v1802 = vld [vmem:[%s7 + $0x10] sm:$0xff]
      %v1803 = vld [vmem:[%s7 + $0x18] sm:$0xff]
      %v1804 = vld [vmem:[%s7 + $0x20] sm:$0xff]
      %v1805 = vld [vmem:[%s7 + $0x28] sm:$0xff]
      %v1806 = vld [vmem:[%s7 + $0x30] sm:$0xff]
      %v1807 = vld [vmem:[%s7 + $0x38] sm:$0xff]
      %v1808 = vld [vmem:[%s7 + $0x40] sm:$0xff]
      %v1809 = vld [vmem:[%s7 + $0x48] sm:$0xff]
      %v1810 = vld [vmem:[%s7 + $0x50] sm:$0xff]
      %v1811 = vld [vmem:[%s7 + $0x58] sm:$0xff]
      %v1812 = vld [vmem:[%s7 + $0x60] sm:$0xff]
      %v1813 = vld [vmem:[%s7 + $0x68] sm:$0xff]
      %v1814 = vld [vmem:[%s7 + $0x70] sm:$0xff]
      %v1815 = vld [vmem:[%s7 + $0x78] sm:$0xff]
      %v1816 = vld [vmem:[%s8] sm:$0x1]
      %1817 = vmatprep.subr.mxu0 0.0
      %1818 = vmatpush1.msra.mxu0 %v1800
      %1819 = vmatprep.subr.mxu0 0.0
      %1820 = vmatpush1.msra.mxu0 %v1801
      %1821 = vmatprep.subr.mxu0 0.0
      %1822 = vmatpush1.msra.mxu0 %v1802
      %1823 = vmatprep.subr.mxu0 0.0
      %1824 = vmatpush1.msra.mxu0 %v1803
      %1825 = vmatprep.subr.mxu0 0.0
      %1826 = vmatpush1.msra.mxu0 %v1804
      %1827 = vmatprep.subr.mxu0 0.0
      %1828 = vmatpush1.msra.mxu0 %v1805
      %1829 = vmatprep.subr.mxu0 0.0
      %1830 = vmatpush1.msra.mxu0 %v1806
      %1831 = vmatprep.subr.mxu0 0.0
      %1832 = vmatpush1.msra.mxu0 %v1807
      %1833 = vmatprep.subr.mxu0 0.0
      %1834 = vmatpush1.msra.mxu0 %v1808
      %1835 = vmatprep.subr.mxu0 0.0
      %1836 = vmatpush1.msra.mxu0 %v1809
      %1837 = vmatprep.subr.mxu0 0.0
      %1838 = vmatpush1.msra.mxu0 %v1810
      %1839 = vmatprep.subr.mxu0 0.0
      %1840 = vmatpush1.msra.mxu0 %v1811
      %1841 = vmatprep.subr.mxu0 0.0
      %1842 = vmatpush1.msra.mxu0 %v1812
      %1843 = vmatprep.subr.mxu0 0.0
      %1844 = vmatpush1.msra.mxu0 %v1813
      %1845 = vmatprep.subr.mxu0 0.0
      %1846 = vmatpush1.msra.mxu0 %v1814
      %1847 = vmatprep.subr.mxu0 0.0
      %1848 = vmatpush1.msra.mxu0 %v1815
      %1849 = vmatprep.subr.mxu0 0.0
      %1850 = vmatpush1.msra.mxu0 0.0
      %1851 = vmatprep.subr.mxu0 0.0
      %1852 = vmatpush1.msra.mxu0 0.0
      %1853 = vmatprep.subr.mxu0 0.0
      %1854 = vmatpush1.msra.mxu0 0.0
      %1855 = vmatprep.subr.mxu0 0.0
      %1856 = vmatpush1.msra.mxu0 0.0
      %1857 = vmatprep.subr.mxu0 0.0
      %1858 = vmatpush1.msra.mxu0 0.0
      %1859 = vmatprep.subr.mxu0 0.0
      %1860 = vmatpush1.msra.mxu0 0.0
      %1861 = vmatprep.subr.mxu0 0.0
      %1862 = vmatpush1.msra.mxu0 0.0
      %1863 = vmatprep.subr.mxu0 0.0
      %1864 = vmatpush1.msra.mxu0 0.0
      %1865 = vmatprep.subr.mxu0 0.0
      %1866 = vmatpush1.msra.mxu0 0.0
      %1867 = vmatprep.subr.mxu0 0.0
      %1868 = vmatpush1.msra.mxu0 0.0
      %1869 = vmatprep.subr.mxu0 0.0
      %1870 = vmatpush1.msra.mxu0 0.0
      %1871 = vmatprep.subr.mxu0 0.0
      %1872 = vmatpush1.msra.mxu0 0.0
      %1873 = vmatprep.subr.mxu0 0.0
      %1874 = vmatpush1.msra.mxu0 0.0
      %1875 = vmatprep.subr.mxu0 0.0
      %1876 = vmatpush1.msra.mxu0 0.0
      %1877 = vmatprep.subr.mxu0 0.0
      %1878 = vmatpush1.msra.mxu0 0.0
      %1879 = vmatprep.subr.mxu0 0.0
      %1880 = vmatpush1.msra.mxu0 0.0
      %1881 = vmatprep.mubr.f32.mxu0 0.0
      %1882 = vmatmul.mubr.f32.gmra.mrb[0].mxu0 %v1799
      %v1883 = vpop.f32.mrb[0].mxu0
      %v1884 = vadd.f32 %v1816, %v1883
      %v1885 = vpop.f32.mrb[0].mxu0
      %1886 = vdwg.mxu0
      %v1887 = vld [vmem:[%s9] sm:$0xff]
      %v1888 = vld [vmem:[%s9 + $0x8] sm:$0xff]
      %v1889 = vld [vmem:[%s10] sm:$0x1]
      %v1891 = vsel %vm816, %v1884, 0
      %1893 = vmatprep.subr.mxu0 0.0
      %1894 = vmatpush1.msra.mxu0 %v1887
      %1895 = vmatprep.subr.mxu0 0.0
      %1896 = vmatpush1.msra.mxu0 %v1888
      %1897 = vmatprep.subr.mxu0 0.0
      %1898 = vmatpush1.msra.mxu0 0.0
      %1899 = vmatprep.subr.mxu0 0.0
      %1900 = vmatpush1.msra.mxu0 0.0
      %1901 = vmatprep.subr.mxu0 0.0
      %1902 = vmatpush1.msra.mxu0 0.0
      %1903 = vmatprep.subr.mxu0 0.0
      %1904 = vmatpush1.msra.mxu0 0.0
      %1905 = vmatprep.subr.mxu0 0.0
      %1906 = vmatpush1.msra.mxu0 0.0
      %1907 = vmatprep.subr.mxu0 0.0
      %1908 = vmatpush1.msra.mxu0 0.0
      %1909 = vmatprep.subr.mxu0 0.0
      %1910 = vmatpush1.msra.mxu0 0.0
      %1911 = vmatprep.subr.mxu0 0.0
      %1912 = vmatpush1.msra.mxu0 0.0
      %1913 = vmatprep.subr.mxu0 0.0
      %1914 = vmatpush1.msra.mxu0 0.0
      %1915 = vmatprep.subr.mxu0 0.0
      %1916 = vmatpush1.msra.mxu0 0.0
      %1917 = vmatprep.subr.mxu0 0.0
      %1918 = vmatpush1.msra.mxu0 0.0
      %1919 = vmatprep.subr.mxu0 0.0
      %1920 = vmatpush1.msra.mxu0 0.0
      %1921 = vmatprep.subr.mxu0 0.0
      %1922 = vmatpush1.msra.mxu0 0.0
      %1923 = vmatprep.subr.mxu0 0.0
      %1924 = vmatpush1.msra.mxu0 0.0
      %1925 = vmatprep.subr.mxu0 0.0
      %1926 = vmatpush1.msra.mxu0 0.0
      %1927 = vmatprep.subr.mxu0 0.0
      %1928 = vmatpush1.msra.mxu0 0.0
      %1929 = vmatprep.subr.mxu0 0.0
      %1930 = vmatpush1.msra.mxu0 0.0
      %1931 = vmatprep.subr.mxu0 0.0
      %1932 = vmatpush1.msra.mxu0 0.0
      %1933 = vmatprep.subr.mxu0 0.0
      %1934 = vmatpush1.msra.mxu0 0.0
      %1935 = vmatprep.subr.mxu0 0.0
      %1936 = vmatpush1.msra.mxu0 0.0
      %1937 = vmatprep.subr.mxu0 0.0
      %1938 = vmatpush1.msra.mxu0 0.0
      %1939 = vmatprep.subr.mxu0 0.0
      %1940 = vmatpush1.msra.mxu0 0.0
      %1941 = vmatprep.subr.mxu0 0.0
      %1942 = vmatpush1.msra.mxu0 0.0
      %1943 = vmatprep.subr.mxu0 0.0
      %1944 = vmatpush1.msra.mxu0 0.0
      %1945 = vmatprep.subr.mxu0 0.0
      %1946 = vmatpush1.msra.mxu0 0.0
      %1947 = vmatprep.subr.mxu0 0.0
      %1948 = vmatpush1.msra.mxu0 0.0
      %1949 = vmatprep.subr.mxu0 0.0
      %1950 = vmatpush1.msra.mxu0 0.0
      %1951 = vmatprep.subr.mxu0 0.0
      %1952 = vmatpush1.msra.mxu0 0.0
      %1953 = vmatprep.subr.mxu0 0.0
      %1954 = vmatpush1.msra.mxu0 0.0
      %1955 = vmatprep.subr.mxu0 0.0
      %1956 = vmatpush1.msra.mxu0 0.0
      %1957 = vmatprep.mubr.f32.mxu0 0.0
      %1958 = vmatmul.mubr.f32.gmra.mrb[0].mxu0 %v1891
      %v1959 = vpop.f32.mrb[0].mxu0
      %v1960 = vadd.f32 %v1889, %v1959
      %v1961 = vpop.f32.mrb[0].mxu0
      %1962 = vdwg.mxu0
      %v1963 = vmax.f32 %v1960, 0.0
      %v1964 = vld [vmem:[%s11] sm:$0xff]
      %v1965 = vld [vmem:[%s12] sm:$0x1]
      %v1967 = vsel %vm1539, %v1963, 0
      %1969 = vmatprep.subr.mxu0 0.0
      %1970 = vmatpush1.msra.mxu0 %v1964
      %1971 = vmatprep.subr.mxu0 0.0
      %1972 = vmatpush1.msra.mxu0 0.0
      %1973 = vmatprep.subr.mxu0 0.0
      %1974 = vmatpush1.msra.mxu0 0.0
      %1975 = vmatprep.subr.mxu0 0.0
      %1976 = vmatpush1.msra.mxu0 0.0
      %1977 = vmatprep.subr.mxu0 0.0
      %1978 = vmatpush1.msra.mxu0 0.0
      %1979 = vmatprep.subr.mxu0 0.0
      %1980 = vmatpush1.msra.mxu0 0.0
      %1981 = vmatprep.subr.mxu0 0.0
      %1982 = vmatpush1.msra.mxu0 0.0
      %1983 = vmatprep.subr.mxu0 0.0
      %1984 = vmatpush1.msra.mxu0 0.0
      %1985 = vmatprep.subr.mxu0 0.0
      %1986 = vmatpush1.msra.mxu0 0.0
      %1987 = vmatprep.subr.mxu0 0.0
      %1988 = vmatpush1.msra.mxu0 0.0
      %1989 = vmatprep.subr.mxu0 0.0
      %1990 = vmatpush1.msra.mxu0 0.0
      %1991 = vmatprep.subr.mxu0 0.0
      %1992 = vmatpush1.msra.mxu0 0.0
      %1993 = vmatprep.subr.mxu0 0.0
      %1994 = vmatpush1.msra.mxu0 0.0
      %1995 = vmatprep.subr.mxu0 0.0
      %1996 = vmatpush1.msra.mxu0 0.0
      %1997 = vmatprep.subr.mxu0 0.0
      %1998 = vmatpush1.msra.mxu0 0.0
      %1999 = vmatprep.subr.mxu0 0.0
      %2000 = vmatpush1.msra.mxu0 0.0
      %2001 = vmatprep.subr.mxu0 0.0
      %2002 = vmatpush1.msra.mxu0 0.0
      %2003 = vmatprep.subr.mxu0 0.0
      %2004 = vmatpush1.msra.mxu0 0.0
      %2005 = vmatprep.subr.mxu0 0.0
      %2006 = vmatpush1.msra.mxu0 0.0
      %2007 = vmatprep.subr.mxu0 0.0
      %2008 = vmatpush1.msra.mxu0 0.0
      %2009 = vmatprep.subr.mxu0 0.0
      %2010 = vmatpush1.msra.mxu0 0.0
      %2011 = vmatprep.subr.mxu0 0.0
      %2012 = vmatpush1.msra.mxu0 0.0
      %2013 = vmatprep.subr.mxu0 0.0
      %2014 = vmatpush1.msra.mxu0 0.0
      %2015 = vmatprep.subr.mxu0 0.0
      %2016 = vmatpush1.msra.mxu0 0.0
      %2017 = vmatprep.subr.mxu0 0.0
      %2018 = vmatpush1.msra.mxu0 0.0
      %2019 = vmatprep.subr.mxu0 0.0
      %2020 = vmatpush1.msra.mxu0 0.0
      %2021 = vmatprep.subr.mxu0 0.0
      %2022 = vmatpush1.msra.mxu0 0.0
      %2023 = vmatprep.subr.mxu0 0.0
      %2024 = vmatpush1.msra.mxu0 0.0
      %2025 = vmatprep.subr.mxu0 0.0
      %2026 = vmatpush1.msra.mxu0 0.0
      %2027 = vmatprep.subr.mxu0 0.0
      %2028 = vmatpush1.msra.mxu0 0.0
      %2029 = vmatprep.subr.mxu0 0.0
      %2030 = vmatpush1.msra.mxu0 0.0
      %2031 = vmatprep.subr.mxu0 0.0
      %2032 = vmatpush1.msra.mxu0 0.0
      %2033 = vmatprep.mubr.f32.mxu0 0.0
      %2034 = vmatmul.mubr.f32.gmra.mrb[0].mxu0 %v1967
      %v2035 = vpop.f32.mrb[0].mxu0
      %v2036 = vadd.f32 %v1965, %v2035
      %v2037 = vpop.f32.mrb[0].mxu0
      %2038 = vdwg.mxu0
      %vm2039 = vcmask 24576
      %2040 = vst.msk [vmem:[#allocation9] sm:$0x1] %vm2039, %v2036
      %v2041 = vld [vmem:[#allocation10] sm:$0x1]
      %v2042 = vld [vmem:[#allocation2] sm:$0x1]
      %2044 = vset.pattern.permute.xlu0 0
      %2045 = vperm.xlu0 %2044, %v2042
      %v2046 = vpop.permute.xlu0 %2045
      %v2048 = vlaneseq
      %v2049 = vshrl.u32 %v2048, 7
      %v2050 = vsub.s32 0, %v2049
      %v2051 = vrot.slane %v2046, %v2050
      %v2052 = vsub.f32 %v2041, %v2051
      %v2053 = vmul.f32 %v2052, 1.442695
      %v2054 = vpow.pop %v2053
      %v2055 = vmul.f32 %v2054, %v1798
      %2056 = vst [vmem:[#allocation10] sm:$0x1] %v2055
    $region65: #{tpu_custom_call.1} parent=1 // pred_fallthru
      _
    // Predicated region
    $region66: #{tpu_custom_call.1} parent=1 // pred_check
      _
    $region67: #{tpu_custom_call.1} parent=1 // pred_check_branch
      %2058 = sbr.rel (0) target = $region69
    $region68: #{tpu_custom_call.1} parent=1 // pred_region
      %s2060 = ssub.s32 16, 16
      %2061 = vsyncadd [#allocation8], %s2060
      %s2063 = sshll.u32 [#allocation9], 4
      %s2064 = int_to_ptr.vmem [resolvable:$true] %s2063
      %2066 = dma.vmem_to_hbm [thread:$0]  %s2064, 16, %s13, [#allocation8]
    $region69: #{tpu_custom_call.1} parent=1 // pred_fallthru
      _
    // Predicated region
    $region70: #{tpu_custom_call.1} parent=1 // pred_check
      _
    $region71: #{tpu_custom_call.1} parent=1 // pred_check_branch
      %2068 = sbr.rel (0) target = $region73
    $region72: #{tpu_custom_call.1} parent=1 // pred_region
      %s2070 = ssub.s32 16, 16
      %2071 = vsyncadd [#allocation11], %s2070
      %s2073 = sshll.u32 [#allocation10], 4
      %s2074 = int_to_ptr.vmem [resolvable:$true] %s2073
      %2076 = dma.vmem_to_hbm [thread:$0]  %s2074, 16, %s14, [#allocation11]
    $region73: #{tpu_custom_call.1} parent=1 // pred_fallthru
      _
    // Predicated region
    $region74: #{tpu_custom_call.1} parent=1 // pred_check
      _
    $region75: #{tpu_custom_call.1} parent=1 // pred_check_branch
      %2078 = sbr.rel (0) target = $region77
    $region76: #{tpu_custom_call.1} parent=1 // pred_region
      %2079 = dma.done [#allocation8], 16
    $region77: #{tpu_custom_call.1} parent=1 // pred_fallthru
      _
    // Predicated region
    $region78: #{tpu_custom_call.1} parent=1 // pred_check
      _
    $region79: #{tpu_custom_call.1} parent=1 // pred_check_branch
      %2081 = sbr.rel (0) target = $region81
    $region80: #{tpu_custom_call.1} parent=1 // pred_region
      %2082 = dma.done [#allocation11], 16
    $region81: #{tpu_custom_call.1} parent=1 // pred_fallthru
      _
    %2083 = vsyncpa [#allocation7], 1
    %2084 = vsyncpa [#allocation8], 1
    %2085 = vsyncpa [#allocation11], 1

</llo_original>
